<compile_context>
chip_gen: v5e
topology: v5e:2x2
jax: 0.10.0
libtpu: 0.0.40
codegen_flags: <defaults>
</compile_context>

<pallas_src>
import jax
import jax.numpy as jnp
from jax import lax
from jax.experimental import pallas as pl
from jax.experimental.pallas import tpu as pltpu


def pam_kernel(xq_ref, xkv_ref, wq_ref, bq_ref, wk_ref, bk_ref,
               wv_ref, bv_ref, gamma_ref, o_ref,
               q_sc, m_sc, l_sc, acc_sc):
    # xq_ref : (1, TQ, C) f32   query rows of x (also used for the residual)
    # xkv_ref: (1, TK, C) f32   key/value rows of x
    # wq/wk_ref: (C, C8P) bf16  zero-padded;  bq/bk_ref: (1, C8P) f32
    # wv_ref : (C, C) bf16      bv_ref: (1, C) f32
    # gamma_ref: (1, 1) f32 in SMEM
    # scratch: q_sc (TQ, C8P) bf16, m_sc/l_sc (TQ, 1) f32, acc_sc (TQ, C) f32
    ki = pl.program_id(2)
    nk = pl.num_programs(2)

    @pl.when(ki == 0)
    def _init():
        xq = xq_ref[0].astype(jnp.bfloat16)                         # (TQ, C)
        q = jnp.dot(xq, wq_ref[...],
                    preferred_element_type=jnp.float32) + bq_ref[...]
        q_sc[...] = q.astype(jnp.bfloat16)                          # (TQ, C8P)
        m_sc[...] = jnp.full_like(m_sc, -jnp.inf)
        l_sc[...] = jnp.zeros_like(l_sc)
        acc_sc[...] = jnp.zeros_like(acc_sc)

    # Project K / V for this KV tile (1x1 convs == channel matmuls).
    xkv = xkv_ref[0].astype(jnp.bfloat16)                           # (TK, C)
    k = jnp.dot(xkv, wk_ref[...],
                preferred_element_type=jnp.float32) + bk_ref[...]   # (TK, C8P)
    v = jnp.dot(xkv, wv_ref[...],
                preferred_element_type=jnp.float32) + bv_ref[...]   # (TK, C)

    # energy[i, j] = q_i . k_j  — contraction over the (padded) channel axis.
    # "nt" form: the MXU consumes the RHS with the contraction on its last dim
    # natively, so no in-kernel transpose of k is required.
    energy = lax.dot_general(q_sc[...], k.astype(jnp.bfloat16),
                             (((1,), (1,)), ((), ())),
                             preferred_element_type=jnp.float32)    # (TQ, TK)

    # Online softmax update (f32 statistics / accumulator).
    m_new = jnp.maximum(m_sc[...], jnp.max(energy, axis=-1, keepdims=True))
    alpha = jnp.exp(m_sc[...] - m_new)                              # (TQ, 1)
    p = jnp.exp(energy - m_new)                                     # (TQ, TK)
    l_sc[...] = alpha * l_sc[...] + jnp.sum(p, axis=-1, keepdims=True)
    acc_sc[...] = alpha * acc_sc[...] + jnp.dot(
        p.astype(jnp.bfloat16), v.astype(jnp.bfloat16),
        preferred_element_type=jnp.float32)                         # (TQ, C)
    m_sc[...] = m_new

    @pl.when(ki == nk - 1)
    def _finalize():
        gamma = gamma_ref[0, 0]
        inv_l = pl.reciprocal(l_sc[...], approx=True)               # EUP slot
        o_ref[0] = (gamma * (acc_sc[...] * inv_l) + xq_ref[0]).astype(o_ref.dtype)


def pam_forward(x, wq, bq, wk, bk, wv, bv, gamma, *, tq=None, tk=None):
    """x: (B, C, H, W) NCHW, weights in PyTorch Conv2d layout (O, C, 1, 1)."""
    B, C, H, W = x.shape
    N = H * W
    C8 = wq.shape[0]
    # Zero-pad Q/K width to a lane-dense multiple of 128.
    C8P = max(128, ((C8 + 127) // 128) * 128)

    # Tile sizes (multiples of 128 when possible; single block otherwise).
    TQ = tq or (128 if N % 128 == 0 else N)
    TK = tk or (128 if N % 128 == 0 else N)
    assert N % TQ == 0 and N % TK == 0

    # NCHW -> (B, N, C) channels-last.
    # TODO(synk): keep activations channels-last end-to-end to drop these
    # boundary transposes (full HBM read+write of the activation tensor).
    x_flat = jnp.transpose(x.reshape(B, C, N), (0, 2, 1)).astype(jnp.float32)

    def prep_qk(w, b):
        w_t = jnp.transpose(w.reshape(C8, C)).astype(jnp.bfloat16)  # (C, C8)
        w_t = jnp.pad(w_t, ((0, 0), (0, C8P - C8)))                 # (C, C8P)
        b_p = jnp.pad(b.reshape(1, C8).astype(jnp.float32),
                      ((0, 0), (0, C8P - C8)))                      # (1, C8P)
        return w_t, b_p

    wq_t, bq2 = prep_qk(wq, bq)
    wk_t, bk2 = prep_qk(wk, bk)
    wv_t = jnp.transpose(wv.reshape(C, C)).astype(jnp.bfloat16)     # (C, C)
    bv2 = bv.reshape(1, C).astype(jnp.float32)
    gamma2 = gamma.reshape(1, 1).astype(jnp.float32)

    grid = (B, N // TQ, N // TK)

    def rep(shape):
        return pl.BlockSpec(shape, lambda b, qi, ki: (0, 0))

    out_flat = pl.pallas_call(
        pam_kernel,
        out_shape=jax.ShapeDtypeStruct((B, N, C), jnp.float32),
        grid_spec=pltpu.PrefetchScalarGridSpec(
            num_scalar_prefetch=0,
            grid=grid,
            in_specs=[
                pl.BlockSpec((1, TQ, C), lambda b, qi, ki: (b, qi, 0)),  # x: q rows
                pl.BlockSpec((1, TK, C), lambda b, qi, ki: (b, ki, 0)),  # x: kv rows
                rep((C, C8P)), rep((1, C8P)),                            # query conv
                rep((C, C8P)), rep((1, C8P)),                            # key conv
                rep((C, C)),   rep((1, C)),                              # value conv
                pl.BlockSpec(memory_space=pltpu.MemorySpace.SMEM),       # gamma
            ],
            out_specs=pl.BlockSpec((1, TQ, C), lambda b, qi, ki: (b, qi, 0)),
            scratch_shapes=[
                pltpu.VMEM((TQ, C8P), jnp.bfloat16),   # projected Q tile
                pltpu.VMEM((TQ, 1), jnp.float32),      # running max m
                pltpu.VMEM((TQ, 1), jnp.float32),      # running denom l
                pltpu.VMEM((TQ, C), jnp.float32),      # output accumulator
            ],
        ),
        compiler_params=pltpu.CompilerParams(
            dimension_semantics=("parallel", "parallel", "arbitrary"),
            vmem_limit_bytes=48 * 1024 * 1024,
        ),
    )(x_flat, x_flat, wq_t, bq2, wk_t, bk2, wv_t, bv2, gamma2)

    # (B, N, C) -> NCHW
    return jnp.transpose(out_flat, (0, 2, 1)).reshape(B, C, H, W)


def pam_reference(x, wq, bq, wk, bk, wv, bv, gamma):
    """Pure-JAX f32 reference mirroring the PyTorch forward exactly."""
    B, C, H, W = x.shape
    N = H * W
    xf = x.reshape(B, C, N)

    def conv1x1(w, b):
        return jnp.einsum('oc,bcn->bon', w.reshape(-1, C), xf) + b[None, :, None]

    q = conv1x1(wq, bq)                              # (B, C8, N)
    k = conv1x1(wk, bk)                              # (B, C8, N)
    v = conv1x1(wv, bv)                              # (B, C,  N)
    energy = jnp.einsum('bci,bcj->bij', q, k)        # (B, N, N)
    att = jax.nn.softmax(energy, axis=-1)
    out = jnp.einsum('bcj,bij->bci', v, att)         # (B, C, N)
    out = out.reshape(B, C, H, W)
    return gamma[0] * out + x


if __name__ == "__main__":
    B, C, H, W = 2, 16, 16, 16          # N = 256, C8 = 2 (padded to 128 lanes)
    C8 = C // 8

    key = jax.random.PRNGKey(0)
    kx, kq, kbq, kk, kbk, kv, kbv = jax.random.split(key, 7)

    x = jax.random.normal(kx, (B, C, H, W), dtype=jnp.float32)

    # Deterministic parameter init (PyTorch Conv2d shapes: (out, in, 1, 1)).
    wq = jax.random.normal(kq,  (C8, C, 1, 1), dtype=jnp.float32) * 0.1
    bq = jax.random.normal(kbq, (C8,),         dtype=jnp.float32) * 0.1
    wk = jax.random.normal(kk,  (C8, C, 1, 1), dtype=jnp.float32) * 0.1
    bk = jax.random.normal(kbk, (C8,),         dtype=jnp.float32) * 0.1
    wv = jax.random.normal(kv,  (C, C, 1, 1),  dtype=jnp.float32) * 0.1
    bv = jax.random.normal(kbv, (C,),          dtype=jnp.float32) * 0.1
    # Module inits gamma to 0 (output == x); use a nonzero deterministic value
    # here so the attention path is actually exercised by the check.
    gamma = jnp.array([0.5], dtype=jnp.float32)

    out = pam_forward(x, wq, bq, wk, bk, wv, bv, gamma)
    out = jax.block_until_ready(out)

    ref = pam_reference(x, wq, bq, wk, bk, wv, bv, gamma)
    assert out.shape == (B, C, H, W)
    # bf16 MXU path + approx reciprocal vs f32 reference: looser tolerance.
    assert jnp.allclose(out, ref, atol=2e-2, rtol=2e-2), \
        f"max abs err = {jnp.max(jnp.abs(out - ref))}"

    print("KERNEL_OK")
</pallas_src>

<mosaic_0001>
module attributes {stable_mosaic.version = 11 : i64} {
  func.func @pam_kernel(%arg0: i32, %arg1: i32, %arg2: i32, %arg3: memref<1x128x16xf32, #tpu.memory_space<vmem>>, %arg4: memref<1x128x16xf32, #tpu.memory_space<vmem>>, %arg5: memref<16x128xbf16, #tpu.memory_space<vmem>>, %arg6: memref<1x128xf32, #tpu.memory_space<vmem>>, %arg7: memref<16x128xbf16, #tpu.memory_space<vmem>>, %arg8: memref<1x128xf32, #tpu.memory_space<vmem>>, %arg9: memref<16x16xbf16, #tpu.memory_space<vmem>>, %arg10: memref<1x16xf32, #tpu.memory_space<vmem>>, %arg11: memref<1x1xf32, #tpu.memory_space<smem>>, %arg12: memref<1x128x16xf32, #tpu.memory_space<vmem>>, %arg13: memref<128x128xbf16, #tpu.memory_space<vmem>>, %arg14: memref<128x1xf32, #tpu.memory_space<vmem>>, %arg15: memref<128x1xf32, #tpu.memory_space<vmem>>, %arg16: memref<128x16xf32, #tpu.memory_space<vmem>>) attributes {dimension_semantics = [#tpu.dimension_semantics<parallel>, #tpu.dimension_semantics<parallel>, #tpu.dimension_semantics<arbitrary>], iteration_bounds = array<i64: 2, 2, 2>, scalar_prefetch = 0 : i64, scratch_operands = 4 : i64, tpu.core_type = #tpu.core_type<tc>, window_params = [{transform_indices = @transform_0, window_bounds = array<i64: 1, 128, 16>}, {transform_indices = @transform_1, window_bounds = array<i64: 1, 128, 16>}, {pipeline_mode = #tpu.pipeline_mode<synchronous>, transform_indices = @transform_2, window_bounds = array<i64: 16, 128>}, {pipeline_mode = #tpu.pipeline_mode<synchronous>, transform_indices = @transform_3, window_bounds = array<i64: 1, 128>}, {pipeline_mode = #tpu.pipeline_mode<synchronous>, transform_indices = @transform_4, window_bounds = array<i64: 16, 128>}, {pipeline_mode = #tpu.pipeline_mode<synchronous>, transform_indices = @transform_5, window_bounds = array<i64: 1, 128>}, {pipeline_mode = #tpu.pipeline_mode<synchronous>, transform_indices = @transform_6, window_bounds = array<i64: 16, 16>}, {pipeline_mode = #tpu.pipeline_mode<synchronous>, transform_indices = @transform_7, window_bounds = array<i64: 1, 16>}, {transform_indices = @transform_8, window_bounds = array<i64: 1, 1>}, {transform_indices = @transform_9, window_bounds = array<i64: 1, 128, 16>}]} {
    %c0_i32 = arith.constant 0 : i32
    %0 = arith.cmpi eq, %arg2, %c0_i32 : i32
    %1 = arith.extui %0 : i1 to i32
    %c0_i32_0 = arith.constant 0 : i32
    %2 = arith.cmpi ne, %1, %c0_i32_0 : i32
    scf.if %2 {
      %c0_33 = arith.constant 0 : index
      %c0_34 = arith.constant 0 : index
      %c0_35 = arith.constant 0 : index
      %47 = vector.load %arg3[%c0_33, %c0_34, %c0_35] : memref<1x128x16xf32, #tpu.memory_space<vmem>>, vector<1x128x16xf32>
      %48 = vector.shape_cast %47 : vector<1x128x16xf32> to vector<128x16xf32>
      %49 = arith.truncf %48 : vector<128x16xf32> to vector<128x16xbf16>
      %c0_36 = arith.constant 0 : index
      %c0_37 = arith.constant 0 : index
      %50 = vector.load %arg5[%c0_36, %c0_37] : memref<16x128xbf16, #tpu.memory_space<vmem>>, vector<16x128xbf16>
      %cst_38 = arith.constant dense<0.000000e+00> : vector<128x128xf32>
      %51 = tpu.matmul %49, %50, %cst_38 {dimension_numbers = #tpu.dot_dimension_numbers<[1], [0], [0], [1], [0, 0, 1, 1], [], []>} : vector<128x16xbf16>, vector<16x128xbf16>, vector<128x128xf32> -> vector<128x128xf32>
      %c0_39 = arith.constant 0 : index
      %c0_40 = arith.constant 0 : index
      %52 = vector.load %arg6[%c0_39, %c0_40] : memref<1x128xf32, #tpu.memory_space<vmem>>, vector<1x128xf32>
      %53 = vector.broadcast %52 : vector<1x128xf32> to vector<128x128xf32>
      %54 = arith.addf %51, %53 : vector<128x128xf32>
      %55 = arith.truncf %54 : vector<128x128xf32> to vector<128x128xbf16>
      %c0_41 = arith.constant 0 : index
      %c0_42 = arith.constant 0 : index
      %56 = vector.load %arg13[%c0_41, %c0_42] : memref<128x128xbf16, #tpu.memory_space<vmem>>, vector<128x128xbf16>
      tpu.vector_store %arg13[%c0_41, %c0_42], %55 {strides = array<i32>} : memref<128x128xbf16, #tpu.memory_space<vmem>>, vector<128x128xbf16>,
      %cst_43 = arith.constant 0xFF800000 : f32
      %57 = vector.broadcast %cst_43 : f32 to vector<128x1xf32>
      %c0_44 = arith.constant 0 : index
      %c0_45 = arith.constant 0 : index
      %58 = vector.load %arg14[%c0_44, %c0_45] : memref<128x1xf32, #tpu.memory_space<vmem>>, vector<128x1xf32>
      tpu.vector_store %arg14[%c0_44, %c0_45], %57 {strides = array<i32>} : memref<128x1xf32, #tpu.memory_space<vmem>>, vector<128x1xf32>,
      %cst_46 = arith.constant 0.000000e+00 : f32
      %59 = vector.broadcast %cst_46 : f32 to vector<128x1xf32>
      %c0_47 = arith.constant 0 : index
      %c0_48 = arith.constant 0 : index
      %60 = vector.load %arg15[%c0_47, %c0_48] : memref<128x1xf32, #tpu.memory_space<vmem>>, vector<128x1xf32>
      tpu.vector_store %arg15[%c0_47, %c0_48], %59 {strides = array<i32>} : memref<128x1xf32, #tpu.memory_space<vmem>>, vector<128x1xf32>,
      %cst_49 = arith.constant 0.000000e+00 : f32
      %61 = vector.broadcast %cst_49 : f32 to vector<128x16xf32>
      %c0_50 = arith.constant 0 : index
      %c0_51 = arith.constant 0 : index
      %62 = vector.load %arg16[%c0_50, %c0_51] : memref<128x16xf32, #tpu.memory_space<vmem>>, vector<128x16xf32>
      tpu.vector_store %arg16[%c0_50, %c0_51], %61 {strides = array<i32>} : memref<128x16xf32, #tpu.memory_space<vmem>>, vector<128x16xf32>,
    } else {
    }
    %c0 = arith.constant 0 : index
    %c0_1 = arith.constant 0 : index
    %c0_2 = arith.constant 0 : index
    %3 = vector.load %arg4[%c0, %c0_1, %c0_2] : memref<1x128x16xf32, #tpu.memory_space<vmem>>, vector<1x128x16xf32>
    %4 = vector.shape_cast %3 : vector<1x128x16xf32> to vector<128x16xf32>
    %5 = arith.truncf %4 : vector<128x16xf32> to vector<128x16xbf16>
    %c0_3 = arith.constant 0 : index
    %c0_4 = arith.constant 0 : index
    %6 = vector.load %arg7[%c0_3, %c0_4] : memref<16x128xbf16, #tpu.memory_space<vmem>>, vector<16x128xbf16>
    %cst = arith.constant dense<0.000000e+00> : vector<128x128xf32>
    %7 = tpu.matmul %5, %6, %cst {dimension_numbers = #tpu.dot_dimension_numbers<[1], [0], [0], [1], [0, 0, 1, 1], [], []>} : vector<128x16xbf16>, vector<16x128xbf16>, vector<128x128xf32> -> vector<128x128xf32>
    %c0_5 = arith.constant 0 : index
    %c0_6 = arith.constant 0 : index
    %8 = vector.load %arg8[%c0_5, %c0_6] : memref<1x128xf32, #tpu.memory_space<vmem>>, vector<1x128xf32>
    %9 = vector.broadcast %8 : vector<1x128xf32> to vector<128x128xf32>
    %10 = arith.addf %7, %9 : vector<128x128xf32>
    %c0_7 = arith.constant 0 : index
    %c0_8 = arith.constant 0 : index
    %11 = vector.load %arg9[%c0_7, %c0_8] : memref<16x16xbf16, #tpu.memory_space<vmem>>, vector<16x16xbf16>
    %cst_9 = arith.constant dense<0.000000e+00> : vector<128x16xf32>
    %12 = tpu.matmul %5, %11, %cst_9 {dimension_numbers = #tpu.dot_dimension_numbers<[1], [0], [0], [1], [0, 0, 1, 1], [], []>} : vector<128x16xbf16>, vector<16x16xbf16>, vector<128x16xf32> -> vector<128x16xf32>
    %c0_10 = arith.constant 0 : index
    %c0_11 = arith.constant 0 : index
    %13 = vector.load %arg10[%c0_10, %c0_11] : memref<1x16xf32, #tpu.memory_space<vmem>>, vector<1x16xf32>
    %14 = vector.broadcast %13 : vector<1x16xf32> to vector<128x16xf32>
    %15 = arith.addf %12, %14 : vector<128x16xf32>
    %c0_12 = arith.constant 0 : index
    %c0_13 = arith.constant 0 : index
    %16 = vector.load %arg13[%c0_12, %c0_13] : memref<128x128xbf16, #tpu.memory_space<vmem>>, vector<128x128xbf16>
    %17 = arith.truncf %10 : vector<128x128xf32> to vector<128x128xbf16>
    %cst_14 = arith.constant dense<0.000000e+00> : vector<128x128xf32>
    %18 = tpu.matmul %16, %17, %cst_14 {dimension_numbers = #tpu.dot_dimension_numbers<[1], [1], [0], [0], [0, 0, 1, 0], [], []>} : vector<128x128xbf16>, vector<128x128xbf16>, vector<128x128xf32> -> vector<128x128xf32>
    %c0_15 = arith.constant 0 : index
    %c0_16 = arith.constant 0 : index
    %19 = vector.load %arg14[%c0_15, %c0_16] : memref<128x1xf32, #tpu.memory_space<vmem>>, vector<128x1xf32>
    %cst_17 = arith.constant dense<0xFF800000> : vector<128xf32>
    %20 = vector.multi_reduction <maximumf>, %18, %cst_17 [1] : vector<128x128xf32> to vector<128xf32>
    %21 = vector.shape_cast %20 : vector<128xf32> to vector<128x1xf32>
    %22 = arith.maximumf %19, %21 : vector<128x1xf32>
    %c0_18 = arith.constant 0 : index
    %c0_19 = arith.constant 0 : index
    %23 = vector.load %arg14[%c0_18, %c0_19] : memref<128x1xf32, #tpu.memory_space<vmem>>, vector<128x1xf32>
    %24 = arith.subf %23, %22 : vector<128x1xf32>
    %25 = math.exp %24 : vector<128x1xf32>
    %26 = vector.broadcast %22 : vector<128x1xf32> to vector<128x128xf32>
    %27 = arith.subf %18, %26 : vector<128x128xf32>
    %28 = math.exp %27 : vector<128x128xf32>
    %c0_20 = arith.constant 0 : index
    %c0_21 = arith.constant 0 : index
    %29 = vector.load %arg15[%c0_20, %c0_21] : memref<128x1xf32, #tpu.memory_space<vmem>>, vector<128x1xf32>
    %30 = arith.mulf %25, %29 : vector<128x1xf32>
    %cst_22 = arith.constant dense<0.000000e+00> : vector<128xf32>
    %31 = vector.multi_reduction <add>, %28, %cst_22 [1] : vector<128x128xf32> to vector<128xf32>
    %32 = vector.shape_cast %31 : vector<128xf32> to vector<128x1xf32>
    %33 = arith.addf %30, %32 : vector<128x1xf32>
    %c0_23 = arith.constant 0 : index
    %c0_24 = arith.constant 0 : index
    %34 = vector.load %arg15[%c0_23, %c0_24] : memref<128x1xf32, #tpu.memory_space<vmem>>, vector<128x1xf32>
    tpu.vector_store %arg15[%c0_23, %c0_24], %33 {strides = array<i32>} : memref<128x1xf32, #tpu.memory_space<vmem>>, vector<128x1xf32>,
    %c0_25 = arith.constant 0 : index
    %c0_26 = arith.constant 0 : index
    %35 = vector.load %arg16[%c0_25, %c0_26] : memref<128x16xf32, #tpu.memory_space<vmem>>, vector<128x16xf32>
    %36 = vector.broadcast %25 : vector<128x1xf32> to vector<128x16xf32>
    %37 = arith.mulf %36, %35 : vector<128x16xf32>
    %38 = arith.truncf %28 : vector<128x128xf32> to vector<128x128xbf16>
    %39 = arith.truncf %15 : vector<128x16xf32> to vector<128x16xbf16>
    %cst_27 = arith.constant dense<0.000000e+00> : vector<128x16xf32>
    %40 = tpu.matmul %38, %39, %cst_27 {dimension_numbers = #tpu.dot_dimension_numbers<[1], [0], [0], [1], [0, 0, 1, 1], [], []>} : vector<128x128xbf16>, vector<128x16xbf16>, vector<128x16xf32> -> vector<128x16xf32>
    %41 = arith.addf %37, %40 : vector<128x16xf32>
    %c0_28 = arith.constant 0 : index
    %c0_29 = arith.constant 0 : index
    %42 = vector.load %arg16[%c0_28, %c0_29] : memref<128x16xf32, #tpu.memory_space<vmem>>, vector<128x16xf32>
    tpu.vector_store %arg16[%c0_28, %c0_29], %41 {strides = array<i32>} : memref<128x16xf32, #tpu.memory_space<vmem>>, vector<128x16xf32>,
    %c0_30 = arith.constant 0 : index
    %c0_31 = arith.constant 0 : index
    %43 = vector.load %arg14[%c0_30, %c0_31] : memref<128x1xf32, #tpu.memory_space<vmem>>, vector<128x1xf32>
    tpu.vector_store %arg14[%c0_30, %c0_31], %22 {strides = array<i32>} : memref<128x1xf32, #tpu.memory_space<vmem>>, vector<128x1xf32>,
    %c1_i32 = arith.constant 1 : i32
    %44 = arith.cmpi eq, %arg2, %c1_i32 : i32
    %45 = arith.extui %44 : i1 to i32
    %c0_i32_32 = arith.constant 0 : i32
    %46 = arith.cmpi ne, %45, %c0_i32_32 : i32
    scf.if %46 {
      %c0_33 = arith.constant 0 : index
      %c0_34 = arith.constant 0 : index
      %47 = memref.load %arg11[%c0_33, %c0_34] : memref<1x1xf32, #tpu.memory_space<smem>>
      %c0_35 = arith.constant 0 : index
      %c0_36 = arith.constant 0 : index
      %48 = vector.load %arg15[%c0_35, %c0_36] : memref<128x1xf32, #tpu.memory_space<vmem>>, vector<128x1xf32>
      %49 = tpu.reciprocal %48 {approx = true} : vector<128x1xf32> -> vector<128x1xf32>
      %c0_37 = arith.constant 0 : index
      %c0_38 = arith.constant 0 : index
      %50 = vector.load %arg16[%c0_37, %c0_38] : memref<128x16xf32, #tpu.memory_space<vmem>>, vector<128x16xf32>
      %51 = vector.broadcast %49 : vector<128x1xf32> to vector<128x16xf32>
      %52 = arith.mulf %50, %51 : vector<128x16xf32>
      %53 = vector.broadcast %47 : f32 to vector<128x16xf32>
      %54 = arith.mulf %53, %52 : vector<128x16xf32>
      %c0_39 = arith.constant 0 : index
      %c0_40 = arith.constant 0 : index
      %c0_41 = arith.constant 0 : index
      %55 = vector.load %arg3[%c0_39, %c0_40, %c0_41] : memref<1x128x16xf32, #tpu.memory_space<vmem>>, vector<1x128x16xf32>
      %56 = vector.shape_cast %55 : vector<1x128x16xf32> to vector<128x16xf32>
      %57 = arith.addf %54, %56 : vector<128x16xf32>
      %c0_42 = arith.constant 0 : index
      %c0_43 = arith.constant 0 : index
      %c0_44 = arith.constant 0 : index
      %58 = vector.load %arg12[%c0_42, %c0_43, %c0_44] : memref<1x128x16xf32, #tpu.memory_space<vmem>>, vector<1x128x16xf32>
      %59 = vector.shape_cast %58 : vector<1x128x16xf32> to vector<128x16xf32>
      %60 = vector.shape_cast %57 : vector<128x16xf32> to vector<1x128x16xf32>
      tpu.vector_store %arg12[%c0_42, %c0_43, %c0_44], %60 {strides = array<i32>} : memref<1x128x16xf32, #tpu.memory_space<vmem>>, vector<1x128x16xf32>,
    } else {
    }
    return
  }
  func.func @transform_0(%arg0: i32, %arg1: i32, %arg2: i32) -> (i32, i32, i32) {
    %c0_i32 = arith.constant 0 : i32
    %c0_i32_0 = arith.constant 0 : i32
    return %arg0, %arg1, %c0_i32 : i32, i32, i32
  }
  func.func @transform_1(%arg0: i32, %arg1: i32, %arg2: i32) -> (i32, i32, i32) {
    %c0_i32 = arith.constant 0 : i32
    %c0_i32_0 = arith.constant 0 : i32
    return %arg0, %arg2, %c0_i32 : i32, i32, i32
  }
  func.func @transform_2(%arg0: i32, %arg1: i32, %arg2: i32) -> (i32, i32) {
    %c0_i32 = arith.constant 0 : i32
    %c0_i32_0 = arith.constant 0 : i32
    %c0_i32_1 = arith.constant 0 : i32
    return %c0_i32, %c0_i32_0 : i32, i32
  }
  func.func @transform_3(%arg0: i32, %arg1: i32, %arg2: i32) -> (i32, i32) {
    %c0_i32 = arith.constant 0 : i32
    %c0_i32_0 = arith.constant 0 : i32
    %c0_i32_1 = arith.constant 0 : i32
    return %c0_i32, %c0_i32_0 : i32, i32
  }
  func.func @transform_4(%arg0: i32, %arg1: i32, %arg2: i32) -> (i32, i32) {
    %c0_i32 = arith.constant 0 : i32
    %c0_i32_0 = arith.constant 0 : i32
    %c0_i32_1 = arith.constant 0 : i32
    return %c0_i32, %c0_i32_0 : i32, i32
  }
  func.func @transform_5(%arg0: i32, %arg1: i32, %arg2: i32) -> (i32, i32) {
    %c0_i32 = arith.constant 0 : i32
    %c0_i32_0 = arith.constant 0 : i32
    %c0_i32_1 = arith.constant 0 : i32
    return %c0_i32, %c0_i32_0 : i32, i32
  }
  func.func @transform_6(%arg0: i32, %arg1: i32, %arg2: i32) -> (i32, i32) {
    %c0_i32 = arith.constant 0 : i32
    %c0_i32_0 = arith.constant 0 : i32
    %c0_i32_1 = arith.constant 0 : i32
    return %c0_i32, %c0_i32_0 : i32, i32
  }
  func.func @transform_7(%arg0: i32, %arg1: i32, %arg2: i32) -> (i32, i32) {
    %c0_i32 = arith.constant 0 : i32
    %c0_i32_0 = arith.constant 0 : i32
    %c0_i32_1 = arith.constant 0 : i32
    return %c0_i32, %c0_i32_0 : i32, i32
  }
  func.func @transform_8(%arg0: i32, %arg1: i32, %arg2: i32) -> (i32, i32) {
    %c0_i32 = arith.constant 0 : i32
    %c0_i32_0 = arith.constant 0 : i32
    %c0_i32_1 = arith.constant 0 : i32
    return %c0_i32, %c0_i32_0 : i32, i32
  }
  func.func @transform_9(%arg0: i32, %arg1: i32, %arg2: i32) -> (i32, i32, i32) {
    %c0_i32 = arith.constant 0 : i32
    %c0_i32_0 = arith.constant 0 : i32
    return %arg0, %arg1, %c0_i32 : i32, i32, i32
  }
}

</mosaic_0001>

<llo_original>
// kernel: tpu_custom_call.1
$region0: #{tpu_custom_call.1}
  #allocation0 [shape = 'u32[]', space=smem, size = 0x4, offset = 0x4, fixed_abs, tag = 'smem constant byte address 0x4 - core index']
  #allocation1 [shape = 'u32[72,128]{1,0:T(1,128)}', space=vmem, size = 0x9000, scoped, tag = 'internal scratch']
  #allocation2 [shape = 'bf16[128,128]{1,0:T(8,128)(2,1)}', space=vmem, size = 0x8000, scoped, tag = 'scratch operand']
  #allocation3 [shape = 'f32[128,1]{1,0:T(8,128)}', space=vmem, size = 0x10000, scoped, tag = 'scratch operand']
  #allocation4 [shape = 'f32[128,1]{1,0:T(8,128)}', space=vmem, size = 0x10000, scoped, tag = 'scratch operand']
  #allocation5 [shape = 'f32[128,16]{1,0:T(8,128)}', space=vmem, size = 0x10000, scoped, tag = 'scratch operand']
  #allocation6 [shape = 'f32[1,1]{1,0:T(1,128)S(6)}', space=smem, size = 0x200, scoped, tag = 'scoped memory for tpu_custom_call.1']
  %s0 = inlined_call_operand.vmem [shape: f32[2,256,16], index: 0, kind: input, shape index: {}]
  %s1 = inlined_call_operand.vmem [shape: f32[2,256,16], index: 1, kind: input, shape index: {}]
  %s2 = inlined_call_operand.vmem [shape: bf16[16,128], index: 2, kind: input, shape index: {}]
  %s3 = inlined_call_operand.vmem [shape: f32[1,128], index: 3, kind: input, shape index: {}]
  %s4 = inlined_call_operand.vmem [shape: bf16[16,128], index: 4, kind: input, shape index: {}]
  %s5 = inlined_call_operand.vmem [shape: f32[1,128], index: 5, kind: input, shape index: {}]
  %s6 = inlined_call_operand.vmem [shape: bf16[16,16], index: 6, kind: input, shape index: {}]
  %s7 = inlined_call_operand.vmem [shape: f32[1,16], index: 7, kind: input, shape index: {}]
  %s8 = inlined_call_operand.<no memory space> [shape: f32[1,1], index: 8, kind: input, shape index: {}]
  %s9 = inlined_call_operand.vmem [shape: f32[2,256,16], index: 9, kind: output, shape index: {}]
  %s10 = sld [smem:[#allocation0]]
  $region77: #{tpu_custom_call.1} parent=0
    _
  %s12 = ssub.s32 1, %s10
  %s13 = scalar_select 0, %s12, %s10
  %14 = sst [smem:[#allocation6]] %s8
  loop: start=0, step=1, limit=10
  $region2: #{tpu_custom_call.1} parent=0 // loop_pre_header
    _
  $region3: #{tpu_custom_call.1} parent=0 // loop_header
    %s16 = sphi 0, %s20
    %p17 = scmp.ge.s32.totalorder %s16, 10
    %s23 = sphi 0, %s42
    %s24 = sphi 0, %s38
    %s25 = sphi 0, %s34
    %s26 = sphi 0, %s23
    %s27 = sphi 0, %s24
    %s28 = sphi 0, %s25
    %s29 = sphi 0, %s26
    %s30 = sphi 0, %s27
    %s31 = sphi 0, %s28
    %s47 = sphi 0, %s49
    %s50 = sphi 0, %s47
    %s51 = sphi 0, %s50
    %s67 = sphi 0, %s51
    %s75 = sphi 0, %s77
    %s78 = sphi 0, %s75
    %s79 = sphi 0, %s78
    %s95 = sphi 0, %s79
    %s99 = sphi 0, %s99
    %s101 = sphi 0, %s99
    %s102 = sphi 0, %s101
    %s116 = sphi 0, %s102
    %s120 = sphi 0, %s120
    %s122 = sphi 0, %s120
    %s123 = sphi 0, %s122
    %s137 = sphi 0, %s123
    %s141 = sphi 0, %s141
    %s143 = sphi 0, %s141
    %s144 = sphi 0, %s143
    %s158 = sphi 0, %s144
    %s162 = sphi 0, %s162
    %s164 = sphi 0, %s162
    %s165 = sphi 0, %s164
    %s179 = sphi 0, %s165
    %s183 = sphi 0, %s183
    %s185 = sphi 0, %s183
    %s186 = sphi 0, %s185
    %s200 = sphi 0, %s186
    %s204 = sphi 0, %s204
    %s206 = sphi 0, %s204
    %s207 = sphi 0, %s206
    %s221 = sphi 0, %s207
    %s225 = sphi 0, %s225
    %s227 = sphi 0, %s225
    %s228 = sphi 0, %s227
    %s242 = sphi 0, %s228
    %s250 = sphi 0, %s252
    %s253 = sphi 0, %s250
    %s254 = sphi 0, %s253
    %s270 = sphi 0, %s254
  $region4: #{tpu_custom_call.1} parent=0 // loop_header_branch
    %19 = sbr.rel (%p17) target = $region8
  $region5: #{tpu_custom_call.1} parent=0 // loop_body
    %s21 = ssub.s32 %s16, 1
    %s22 = ssub.s32 %s16, 2
    %s32 = sadd.s32 1, %s25
    %p33 = scmp.ge.s32.totalorder %s32, 2
    %s34 = scalar_select %p33, 0, %s32
    %s35 = sadd.s32 1, %s24
    %s36 = scalar_select %p33, %s35, %s24
    %p37 = scmp.ge.s32.totalorder %s36, 2
    %s38 = scalar_select %p37, 0, %s36
    %s39 = sadd.s32 1, %s23
    %s40 = scalar_select %p37, %s39, %s23
    %p41 = scmp.ge.s32.totalorder %s40, 2
    %s42 = scalar_select %p41, 0, %s40
    %s43 = ssub.s32 %s23, %s42
    %s44 = ssub.s32 %s24, %s38
    %s45 = sor.u32 %s43, %s44
    %p46 = scmp.eq.s32.totalorder %s45, 0
    %s48 = sadd.s32 %s47, 1
    %s49 = scalar_select %p46, %s47, %s48
    %p52 = pneg %p46
    %p53 = scmp.eq.s32.totalorder %s16, 7
    %p54 = por %p52, %p53
    %p55 = scmp.ne.s32.totalorder %s47, %s50
    %p56 = scmp.eq.s32.totalorder %s16, 0
    %p57 = por %p55, %p56
    %p58 = scmp.ne.s32.totalorder %s47, %s50
    %p59 = scmp.eq.s32.totalorder %s21, 7
    %p60 = por %p58, %p59
    %p61 = scmp.ne.s32.totalorder %s50, %s51
    %p62 = scmp.eq.s32.totalorder %s21, 0
    %p63 = por %p61, %p62
    %p64 = scmp.ne.s32.totalorder %s50, %s51
    %p65 = scmp.eq.s32.totalorder %s22, 7
    %p66 = por %p64, %p65
    %p68 = scmp.ne.s32.totalorder %s51, %s67
    %p69 = scmp.eq.s32.totalorder %s22, 0
    %p70 = por %p68, %p69
    %s71 = ssub.s32 %s23, %s42
    %s72 = ssub.s32 %s25, %s34
    %s73 = sor.u32 %s71, %s72
    %p74 = scmp.eq.s32.totalorder %s73, 0
    %s76 = sadd.s32 %s75, 1
    %s77 = scalar_select %p74, %s75, %s76
    %p80 = pneg %p74
    %p81 = scmp.eq.s32.totalorder %s16, 7
    %p82 = por %p80, %p81
    %p83 = scmp.ne.s32.totalorder %s75, %s78
    %p84 = scmp.eq.s32.totalorder %s16, 0
    %p85 = por %p83, %p84
    %p86 = scmp.ne.s32.totalorder %s75, %s78
    %p87 = scmp.eq.s32.totalorder %s21, 7
    %p88 = por %p86, %p87
    %p89 = scmp.ne.s32.totalorder %s78, %s79
    %p90 = scmp.eq.s32.totalorder %s21, 0
    %p91 = por %p89, %p90
    %p92 = scmp.ne.s32.totalorder %s78, %s79
    %p93 = scmp.eq.s32.totalorder %s22, 7
    %p94 = por %p92, %p93
    %p96 = scmp.ne.s32.totalorder %s79, %s95
    %p97 = scmp.eq.s32.totalorder %s22, 0
    %p98 = por %p96, %p97
    %s100 = sadd.s32 %s99, 1
    %p103 = scmp.eq.s32.totalorder %s16, 7
    %p104 = scmp.ne.s32.totalorder %s99, %s101
    %p105 = scmp.eq.s32.totalorder %s16, 0
    %p106 = por %p104, %p105
    %p107 = scmp.ne.s32.totalorder %s99, %s101
    %p108 = scmp.eq.s32.totalorder %s21, 7
    %p109 = por %p107, %p108
    %p110 = scmp.ne.s32.totalorder %s101, %s102
    %p111 = scmp.eq.s32.totalorder %s21, 0
    %p112 = por %p110, %p111
    %p113 = scmp.ne.s32.totalorder %s101, %s102
    %p114 = scmp.eq.s32.totalorder %s22, 7
    %p115 = por %p113, %p114
    %p117 = scmp.ne.s32.totalorder %s102, %s116
    %p118 = scmp.eq.s32.totalorder %s22, 0
    %p119 = por %p117, %p118
    %s121 = sadd.s32 %s120, 1
    %p124 = scmp.eq.s32.totalorder %s16, 7
    %p125 = scmp.ne.s32.totalorder %s120, %s122
    %p126 = scmp.eq.s32.totalorder %s16, 0
    %p127 = por %p125, %p126
    %p128 = scmp.ne.s32.totalorder %s120, %s122
    %p129 = scmp.eq.s32.totalorder %s21, 7
    %p130 = por %p128, %p129
    %p131 = scmp.ne.s32.totalorder %s122, %s123
    %p132 = scmp.eq.s32.totalorder %s21, 0
    %p133 = por %p131, %p132
    %p134 = scmp.ne.s32.totalorder %s122, %s123
    %p135 = scmp.eq.s32.totalorder %s22, 7
    %p136 = por %p134, %p135
    %p138 = scmp.ne.s32.totalorder %s123, %s137
    %p139 = scmp.eq.s32.totalorder %s22, 0
    %p140 = por %p138, %p139
    %s142 = sadd.s32 %s141, 1
    %p145 = scmp.eq.s32.totalorder %s16, 7
    %p146 = scmp.ne.s32.totalorder %s141, %s143
    %p147 = scmp.eq.s32.totalorder %s16, 0
    %p148 = por %p146, %p147
    %p149 = scmp.ne.s32.totalorder %s141, %s143
    %p150 = scmp.eq.s32.totalorder %s21, 7
    %p151 = por %p149, %p150
    %p152 = scmp.ne.s32.totalorder %s143, %s144
    %p153 = scmp.eq.s32.totalorder %s21, 0
    %p154 = por %p152, %p153
    %p155 = scmp.ne.s32.totalorder %s143, %s144
    %p156 = scmp.eq.s32.totalorder %s22, 7
    %p157 = por %p155, %p156
    %p159 = scmp.ne.s32.totalorder %s144, %s158
    %p160 = scmp.eq.s32.totalorder %s22, 0
    %p161 = por %p159, %p160
    %s163 = sadd.s32 %s162, 1
    %p166 = scmp.eq.s32.totalorder %s16, 7
    %p167 = scmp.ne.s32.totalorder %s162, %s164
    %p168 = scmp.eq.s32.totalorder %s16, 0
    %p169 = por %p167, %p168
    %p170 = scmp.ne.s32.totalorder %s162, %s164
    %p171 = scmp.eq.s32.totalorder %s21, 7
    %p172 = por %p170, %p171
    %p173 = scmp.ne.s32.totalorder %s164, %s165
    %p174 = scmp.eq.s32.totalorder %s21, 0
    %p175 = por %p173, %p174
    %p176 = scmp.ne.s32.totalorder %s164, %s165
    %p177 = scmp.eq.s32.totalorder %s22, 7
    %p178 = por %p176, %p177
    %p180 = scmp.ne.s32.totalorder %s165, %s179
    %p181 = scmp.eq.s32.totalorder %s22, 0
    %p182 = por %p180, %p181
    %s184 = sadd.s32 %s183, 1
    %p187 = scmp.eq.s32.totalorder %s16, 7
    %p188 = scmp.ne.s32.totalorder %s183, %s185
    %p189 = scmp.eq.s32.totalorder %s16, 0
    %p190 = por %p188, %p189
    %p191 = scmp.ne.s32.totalorder %s183, %s185
    %p192 = scmp.eq.s32.totalorder %s21, 7
    %p193 = por %p191, %p192
    %p194 = scmp.ne.s32.totalorder %s185, %s186
    %p195 = scmp.eq.s32.totalorder %s21, 0
    %p196 = por %p194, %p195
    %p197 = scmp.ne.s32.totalorder %s185, %s186
    %p198 = scmp.eq.s32.totalorder %s22, 7
    %p199 = por %p197, %p198
    %p201 = scmp.ne.s32.totalorder %s186, %s200
    %p202 = scmp.eq.s32.totalorder %s22, 0
    %p203 = por %p201, %p202
    %s205 = sadd.s32 %s204, 1
    %p208 = scmp.eq.s32.totalorder %s16, 7
    %p209 = scmp.ne.s32.totalorder %s204, %s206
    %p210 = scmp.eq.s32.totalorder %s16, 0
    %p211 = por %p209, %p210
    %p212 = scmp.ne.s32.totalorder %s204, %s206
    %p213 = scmp.eq.s32.totalorder %s21, 7
    %p214 = por %p212, %p213
    %p215 = scmp.ne.s32.totalorder %s206, %s207
    %p216 = scmp.eq.s32.totalorder %s21, 0
    %p217 = por %p215, %p216
    %p218 = scmp.ne.s32.totalorder %s206, %s207
    %p219 = scmp.eq.s32.totalorder %s22, 7
    %p220 = por %p218, %p219
    %p222 = scmp.ne.s32.totalorder %s207, %s221
    %p223 = scmp.eq.s32.totalorder %s22, 0
    %p224 = por %p222, %p223
    %s226 = sadd.s32 %s225, 1
    %p229 = scmp.eq.s32.totalorder %s16, 7
    %p230 = scmp.ne.s32.totalorder %s225, %s227
    %p231 = scmp.eq.s32.totalorder %s16, 0
    %p232 = por %p230, %p231
    %p233 = scmp.ne.s32.totalorder %s225, %s227
    %p234 = scmp.eq.s32.totalorder %s21, 7
    %p235 = por %p233, %p234
    %p236 = scmp.ne.s32.totalorder %s227, %s228
    %p237 = scmp.eq.s32.totalorder %s21, 0
    %p238 = por %p236, %p237
    %p239 = scmp.ne.s32.totalorder %s227, %s228
    %p240 = scmp.eq.s32.totalorder %s22, 7
    %p241 = por %p239, %p240
    %p243 = scmp.ne.s32.totalorder %s228, %s242
    %p244 = scmp.eq.s32.totalorder %s22, 0
    %p245 = por %p243, %p244
    %s246 = ssub.s32 %s23, %s42
    %s247 = ssub.s32 %s24, %s38
    %s248 = sor.u32 %s246, %s247
    %p249 = scmp.eq.s32.totalorder %s248, 0
    %s251 = sadd.s32 %s250, 1
    %s252 = scalar_select %p249, %s250, %s251
    %p255 = pneg %p249
    %p256 = scmp.eq.s32.totalorder %s16, 7
    %p257 = por %p255, %p256
    %p258 = scmp.ne.s32.totalorder %s250, %s253
    %p259 = scmp.eq.s32.totalorder %s16, 0
    %p260 = por %p258, %p259
    %p261 = scmp.ne.s32.totalorder %s250, %s253
    %p262 = scmp.eq.s32.totalorder %s21, 7
    %p263 = por %p261, %p262
    %p264 = scmp.ne.s32.totalorder %s253, %s254
    %p265 = scmp.eq.s32.totalorder %s21, 0
    %p266 = por %p264, %p265
    %p267 = scmp.ne.s32.totalorder %s253, %s254
    %p268 = scmp.eq.s32.totalorder %s22, 7
    %p269 = por %p267, %p268
    %p271 = scmp.ne.s32.totalorder %s254, %s270
    %p272 = scmp.eq.s32.totalorder %s22, 0
    %p273 = por %p271, %p272
    %p274 = scmp.le.s32.totalorder 1, %s16
    %p275 = scmp.lt.s32.totalorder %s16, 9
    %p276 = pnand %p274, %p275
    %p277 = pneg %p276
    // Predicated region
    $region9: #{tpu_custom_call.1} parent=5 // pred_check
      _
    $region10: #{tpu_custom_call.1} parent=5 // pred_check_branch
      %279 = sbr.rel (%p276) target = $region12
    $region11: #{tpu_custom_call.1} parent=5 // pred_region
      %s280 = ssub.s32 %s16, 1
      // Predicated region
      $region13: #{tpu_custom_call.1} parent=11 // pred_check
        %p281 = pneg %p112
      $region14: #{tpu_custom_call.1} parent=11 // pred_check_branch
        %283 = sbr.rel (%p281) target = $region16
      $region15: #{tpu_custom_call.1} parent=11 // pred_region
        _
      $region16: #{tpu_custom_call.1} parent=11 // pred_fallthru
        _
      // Predicated region
      $region17: #{tpu_custom_call.1} parent=11 // pred_check
        %p284 = pneg %p133
      $region18: #{tpu_custom_call.1} parent=11 // pred_check_branch
        %286 = sbr.rel (%p284) target = $region20
      $region19: #{tpu_custom_call.1} parent=11 // pred_region
        _
      $region20: #{tpu_custom_call.1} parent=11 // pred_fallthru
        _
      // Predicated region
      $region21: #{tpu_custom_call.1} parent=11 // pred_check
        %p287 = pneg %p154
      $region22: #{tpu_custom_call.1} parent=11 // pred_check_branch
        %289 = sbr.rel (%p287) target = $region24
      $region23: #{tpu_custom_call.1} parent=11 // pred_region
        _
      $region24: #{tpu_custom_call.1} parent=11 // pred_fallthru
        _
      // Predicated region
      $region25: #{tpu_custom_call.1} parent=11 // pred_check
        %p290 = pneg %p175
      $region26: #{tpu_custom_call.1} parent=11 // pred_check_branch
        %292 = sbr.rel (%p290) target = $region28
      $region27: #{tpu_custom_call.1} parent=11 // pred_region
        _
      $region28: #{tpu_custom_call.1} parent=11 // pred_fallthru
        _
      // Predicated region
      $region29: #{tpu_custom_call.1} parent=11 // pred_check
        %p293 = pneg %p196
      $region30: #{tpu_custom_call.1} parent=11 // pred_check_branch
        %295 = sbr.rel (%p293) target = $region32
      $region31: #{tpu_custom_call.1} parent=11 // pred_region
        _
      $region32: #{tpu_custom_call.1} parent=11 // pred_fallthru
        _
      // Predicated region
      $region33: #{tpu_custom_call.1} parent=11 // pred_check
        %p296 = pneg %p217
      $region34: #{tpu_custom_call.1} parent=11 // pred_check_branch
        %298 = sbr.rel (%p296) target = $region36
      $region35: #{tpu_custom_call.1} parent=11 // pred_region
        _
      $region36: #{tpu_custom_call.1} parent=11 // pred_fallthru
        _
      // Predicated region
      $region37: #{tpu_custom_call.1} parent=11 // pred_check
        %p299 = pneg %p238
      $region38: #{tpu_custom_call.1} parent=11 // pred_check_branch
        %301 = sbr.rel (%p299) target = $region40
      $region39: #{tpu_custom_call.1} parent=11 // pred_region
        _
      $region40: #{tpu_custom_call.1} parent=11 // pred_fallthru
        _
    $region12: #{tpu_custom_call.1} parent=5 // pred_fallthru
      _
    %p302 = scmp.lt.s32.totalorder %s16, 8
    // Predicated region
    $region41: #{tpu_custom_call.1} parent=5 // pred_check
      %p303 = pneg %p302
    $region42: #{tpu_custom_call.1} parent=5 // pred_check_branch
      %305 = sbr.rel (%p303) target = $region44
    $region43: #{tpu_custom_call.1} parent=5 // pred_region
      // Predicated region
      $region45: #{tpu_custom_call.1} parent=43 // pred_check
        %p306 = pneg %p57
      $region46: #{tpu_custom_call.1} parent=43 // pred_check_branch
        %308 = sbr.rel (%p306) target = $region48
      $region47: #{tpu_custom_call.1} parent=43 // pred_region
        %s309 = smul.u32 16, %s24
        %p310 = scmp.lt.s32.totalorder %s23, 1
        %s311 = scalar_select %p310, %s23, 1
        %p312 = scmp.lt.s32.totalorder %s309, 31
        %s313 = scalar_select %p312, %s309, 31
        %s314 = smul.addr %s311, 32
        %s315 = sadd.s32 %s313, %s314
        %s316 = smul.addr %s315, 8
        %s317 = scalar_lea.vmem %s0, %s316
        %s318 = smul.u32 16, %s24
      $region48: #{tpu_custom_call.1} parent=43 // pred_fallthru
        _
      // Predicated region
      $region49: #{tpu_custom_call.1} parent=43 // pred_check
        %p319 = pneg %p85
      $region50: #{tpu_custom_call.1} parent=43 // pred_check_branch
        %321 = sbr.rel (%p319) target = $region52
      $region51: #{tpu_custom_call.1} parent=43 // pred_region
        %s322 = smul.u32 16, %s25
        %p323 = scmp.lt.s32.totalorder %s23, 1
        %s324 = scalar_select %p323, %s23, 1
        %p325 = scmp.lt.s32.totalorder %s322, 31
        %s326 = scalar_select %p325, %s322, 31
        %s327 = smul.addr %s324, 32
        %s328 = sadd.s32 %s326, %s327
        %s329 = smul.addr %s328, 8
        %s330 = scalar_lea.vmem %s1, %s329
        %s331 = smul.u32 16, %s25
      $region52: #{tpu_custom_call.1} parent=43 // pred_fallthru
        _
    $region44: #{tpu_custom_call.1} parent=5 // pred_fallthru
      _
    %p332 = scmp.le.s32.totalorder 1, %s16
    %p333 = scmp.lt.s32.totalorder %s16, 9
    %p334 = pnand %p332, %p333
    %p335 = pneg %p334
    // Predicated region
    $region53: #{tpu_custom_call.1} parent=5 // pred_check
      _
    $region54: #{tpu_custom_call.1} parent=5 // pred_check_branch
      %337 = sbr.rel (%p334) target = $region56
    $region55: #{tpu_custom_call.1} parent=5 // pred_region
      %s338 = ssub.s32 %s16, 1
      %s339 = smul.u32 16, %s27
      %p340 = scmp.lt.s32.totalorder %s26, 1
      %s341 = scalar_select %p340, %s26, 1
      %p342 = scmp.lt.s32.totalorder %s339, 31
      %s343 = scalar_select %p342, %s339, 31
      %s344 = smul.addr %s341, 32
      %s345 = sadd.s32 %s343, %s344
      %s346 = smul.addr %s345, 8
      %s347 = scalar_lea.vmem %s0, %s346
      %p348 = pneg %p63
      %p349 = pneg %p60
      %s350 = smul.u32 16, %s28
      %p351 = scmp.lt.s32.totalorder %s26, 1
      %s352 = scalar_select %p351, %s26, 1
      %p353 = scmp.lt.s32.totalorder %s350, 31
      %s354 = scalar_select %p353, %s350, 31
      %s355 = smul.addr %s352, 32
      %s356 = sadd.s32 %s354, %s355
      %s357 = smul.addr %s356, 8
      %s358 = scalar_lea.vmem %s1, %s357
      %p359 = pneg %p91
      %p360 = pneg %p88
      %p361 = pneg %p112
      %p362 = pneg %p109
      %p363 = pneg %p133
      %p364 = pneg %p130
      %p365 = pneg %p154
      %p366 = pneg %p151
      %p367 = pneg %p175
      %p368 = pneg %p172
      %p369 = pneg %p196
      %p370 = pneg %p193
      %p371 = pneg %p217
      %p372 = pneg %p214
      %p373 = pneg %p238
      %p374 = pneg %p235
      %p375 = pneg %p266
      %p376 = pneg %p263
      %s377 = smul.u32 16, %s27
      %p378 = scmp.lt.s32.totalorder %s26, 1
      %s379 = scalar_select %p378, %s26, 1
      %p380 = scmp.lt.s32.totalorder %s377, 31
      %s381 = scalar_select %p380, %s377, 31
      %s382 = smul.addr %s379, 32
      %s383 = sadd.s32 %s381, %s382
      %s384 = smul.addr %s383, 8
      %s385 = scalar_lea.vmem %s9, %s384
      %s386 = smul.u32 16, %s27
      %p387 = scmp.lt.s32.totalorder %s26, 1
      %s388 = scalar_select %p387, %s26, 1
      %p389 = scmp.lt.s32.totalorder %s386, 31
      %s390 = scalar_select %p389, %s386, 31
      %s391 = smul.addr %s388, 32
      %s392 = sadd.s32 %s390, %s391
      %s393 = smul.addr %s392, 8
      %s394 = scalar_lea.vmem %s0, %s393
      %s395 = smul.u32 16, %s27
      %s396 = smul.u32 16, %s28
      %p397 = scmp.lt.s32.totalorder %s26, 1
      %s398 = scalar_select %p397, %s26, 1
      %p399 = scmp.lt.s32.totalorder %s396, 31
      %s400 = scalar_select %p399, %s396, 31
      %s401 = smul.addr %s398, 32
      %s402 = sadd.s32 %s400, %s401
      %s403 = smul.addr %s402, 8
      %s404 = scalar_lea.vmem %s1, %s403
      %s405 = smul.u32 16, %s28
      %s406 = smul.u32 16, %s27
      %p407 = scmp.lt.s32.totalorder %s26, 1
      %s408 = scalar_select %p407, %s26, 1
      %p409 = scmp.lt.s32.totalorder %s406, 31
      %s410 = scalar_select %p409, %s406, 31
      %s411 = smul.addr %s408, 32
      %s412 = sadd.s32 %s410, %s411
      %s413 = smul.addr %s412, 8
      %s414 = scalar_lea.vmem %s9, %s413
      %s415 = smul.u32 16, %s27
      %p417 = scmp.eq.s32.totalorder %s28, 0
      // Predicated region
      $region57: #{tpu_custom_call.1} parent=55 // pred_check
        %p418 = pneg %p417
      $region58: #{tpu_custom_call.1} parent=55 // pred_check_branch
        %420 = sbr.rel (%p418) target = $region60
      $region59: #{tpu_custom_call.1} parent=55 // pred_region
        %v421 = vld [vmem:[%s394] sm:$0xff]
        %v422 = vld [vmem:[%s394 + $0x8] sm:$0xff]
        %v423 = vld [vmem:[%s394 + $0x10] sm:$0xff]
        %v424 = vld [vmem:[%s394 + $0x18] sm:$0xff]
        %v425 = vld [vmem:[%s394 + $0x20] sm:$0xff]
        %v426 = vld [vmem:[%s394 + $0x28] sm:$0xff]
        %v427 = vld [vmem:[%s394 + $0x30] sm:$0xff]
        %v428 = vld [vmem:[%s394 + $0x38] sm:$0xff]
        %v429 = vld [vmem:[%s394 + $0x40] sm:$0xff]
        %v430 = vld [vmem:[%s394 + $0x48] sm:$0xff]
        %v431 = vld [vmem:[%s394 + $0x50] sm:$0xff]
        %v432 = vld [vmem:[%s394 + $0x58] sm:$0xff]
        %v433 = vld [vmem:[%s394 + $0x60] sm:$0xff]
        %v434 = vld [vmem:[%s394 + $0x68] sm:$0xff]
        %v435 = vld [vmem:[%s394 + $0x70] sm:$0xff]
        %v436 = vld [vmem:[%s394 + $0x78] sm:$0xff]
        %v437 = vpack.c.bf16 %v422, %v421
        %v438 = vpack.c.bf16 %v424, %v423
        %v439 = vpack.c.bf16 %v426, %v425
        %v440 = vpack.c.bf16 %v428, %v427
        %v441 = vpack.c.bf16 %v430, %v429
        %v442 = vpack.c.bf16 %v432, %v431
        %v443 = vpack.c.bf16 %v434, %v433
        %v444 = vpack.c.bf16 %v436, %v435
        %v445 = vld [vmem:[%s2] sm:$0xf]
        %v446 = vld [vmem:[%s2 + $0x4] sm:$0xf]
        %v447 = vld [vmem:[%s3] sm:$0x1]
        %v449 = vperm.slane %v447, 0
        %v453 = vunpack.c.l.b16 %v445
        %v454 = vunpack.c.l.b16 %v446
        %v455 = vpack.c.b16 %v454, %v453
        %vm457 = vcmask 130048
        %v459 = vsel %vm457, %v437, 0
        %v462 = vsel %vm457, %v438, 0
        %v465 = vsel %vm457, %v439, 0
        %v468 = vsel %vm457, %v440, 0
        %v471 = vsel %vm457, %v441, 0
        %v474 = vsel %vm457, %v442, 0
        %v477 = vsel %vm457, %v443, 0
        %v480 = vsel %vm457, %v444, 0
        %482 = vmatpush.bf16.msra.mxu0 0
        %483 = vmatpush.bf16.msra.mxu0 0
        %484 = vmatpush.bf16.msra.mxu0 0
        %485 = vmatpush.bf16.msra.mxu0 0
        %486 = vmatpush.bf16.msra.mxu0 0
        %487 = vmatpush.bf16.msra.mxu0 0
        %488 = vmatpush.bf16.msra.mxu0 0
        %489 = vmatpush.bf16.msra.mxu0 %v455
        %490 = vmatmul.bf16.gmra.mxu0 %v459
        %v491 = vpop.f32.mrf.mxu0
        %v492 = vadd.f32 %v449, %v491
        %v493 = vpop.f32.mrf.mxu0
        %v494 = vadd.f32 %v449, %v493
        %495 = vmatmul.bf16.gmra.mxu0 %v462
        %v496 = vpop.f32.mrf.mxu0
        %v497 = vadd.f32 %v449, %v496
        %v498 = vpop.f32.mrf.mxu0
        %v499 = vadd.f32 %v449, %v498
        %500 = vmatmul.bf16.gmra.mxu0 %v465
        %v501 = vpop.f32.mrf.mxu0
        %v502 = vadd.f32 %v449, %v501
        %v503 = vpop.f32.mrf.mxu0
        %v504 = vadd.f32 %v449, %v503
        %505 = vmatmul.bf16.gmra.mxu0 %v468
        %v506 = vpop.f32.mrf.mxu0
        %v507 = vadd.f32 %v449, %v506
        %v508 = vpop.f32.mrf.mxu0
        %v509 = vadd.f32 %v449, %v508
        %510 = vmatmul.bf16.gmra.mxu0 %v471
        %v511 = vpop.f32.mrf.mxu0
        %v512 = vadd.f32 %v449, %v511
        %v513 = vpop.f32.mrf.mxu0
        %v514 = vadd.f32 %v449, %v513
        %515 = vmatmul.bf16.gmra.mxu0 %v474
        %v516 = vpop.f32.mrf.mxu0
        %v517 = vadd.f32 %v449, %v516
        %v518 = vpop.f32.mrf.mxu0
        %v519 = vadd.f32 %v449, %v518
        %520 = vmatmul.bf16.gmra.mxu0 %v477
        %v521 = vpop.f32.mrf.mxu0
        %v522 = vadd.f32 %v449, %v521
        %v523 = vpop.f32.mrf.mxu0
        %v524 = vadd.f32 %v449, %v523
        %525 = vmatmul.bf16.gmra.mxu0 %v480
        %v526 = vpop.f32.mrf.mxu0
        %v527 = vadd.f32 %v449, %v526
        %v528 = vpop.f32.mrf.mxu0
        %v529 = vadd.f32 %v449, %v528
        %530 = vdwg.mxu0
        %v531 = vpack.c.bf16 %v492, %v492
        %v532 = vpack.c.bf16 %v494, %v494
        %v533 = vpack.c.bf16 %v497, %v497
        %v534 = vpack.c.bf16 %v499, %v499
        %v535 = vpack.c.bf16 %v502, %v502
        %v536 = vpack.c.bf16 %v504, %v504
        %v537 = vpack.c.bf16 %v507, %v507
        %v538 = vpack.c.bf16 %v509, %v509
        %v539 = vpack.c.bf16 %v512, %v512
        %v540 = vpack.c.bf16 %v514, %v514
        %v541 = vpack.c.bf16 %v517, %v517
        %v542 = vpack.c.bf16 %v519, %v519
        %v543 = vpack.c.bf16 %v522, %v522
        %v544 = vpack.c.bf16 %v524, %v524
        %v545 = vpack.c.bf16 %v527, %v527
        %v546 = vpack.c.bf16 %v529, %v529
        %547 = vst [vmem:[#allocation2] sm:$0xf] %v531
        %548 = vst [vmem:[#allocation2 + $0x4] sm:$0xf] %v532
        %549 = vst [vmem:[#allocation2 + $0x8] sm:$0xf] %v533
        %550 = vst [vmem:[#allocation2 + $0xc] sm:$0xf] %v534
        %551 = vst [vmem:[#allocation2 + $0x10] sm:$0xf] %v535
        %552 = vst [vmem:[#allocation2 + $0x14] sm:$0xf] %v536
        %553 = vst [vmem:[#allocation2 + $0x18] sm:$0xf] %v537
        %554 = vst [vmem:[#allocation2 + $0x1c] sm:$0xf] %v538
        %555 = vst [vmem:[#allocation2 + $0x20] sm:$0xf] %v539
        %556 = vst [vmem:[#allocation2 + $0x24] sm:$0xf] %v540
        %557 = vst [vmem:[#allocation2 + $0x28] sm:$0xf] %v541
        %558 = vst [vmem:[#allocation2 + $0x2c] sm:$0xf] %v542
        %559 = vst [vmem:[#allocation2 + $0x30] sm:$0xf] %v543
        %560 = vst [vmem:[#allocation2 + $0x34] sm:$0xf] %v544
        %561 = vst [vmem:[#allocation2 + $0x38] sm:$0xf] %v545
        %562 = vst [vmem:[#allocation2 + $0x3c] sm:$0xf] %v546
        %vm563 = vcmask 7168
        %564 = vst.msk [vmem:[#allocation3] sm:$0xff] %vm563, -inf
        %565 = vst.msk [vmem:[#allocation3 + $0x8] sm:$0xff] %vm563, -inf
        %566 = vst.msk [vmem:[#allocation3 + $0x10] sm:$0xff] %vm563, -inf
        %567 = vst.msk [vmem:[#allocation3 + $0x18] sm:$0xff] %vm563, -inf
        %568 = vst.msk [vmem:[#allocation3 + $0x20] sm:$0xff] %vm563, -inf
        %569 = vst.msk [vmem:[#allocation3 + $0x28] sm:$0xff] %vm563, -inf
        %570 = vst.msk [vmem:[#allocation3 + $0x30] sm:$0xff] %vm563, -inf
        %571 = vst.msk [vmem:[#allocation3 + $0x38] sm:$0xff] %vm563, -inf
        %572 = vst.msk [vmem:[#allocation3 + $0x40] sm:$0xff] %vm563, -inf
        %573 = vst.msk [vmem:[#allocation3 + $0x48] sm:$0xff] %vm563, -inf
        %574 = vst.msk [vmem:[#allocation3 + $0x50] sm:$0xff] %vm563, -inf
        %575 = vst.msk [vmem:[#allocation3 + $0x58] sm:$0xff] %vm563, -inf
        %576 = vst.msk [vmem:[#allocation3 + $0x60] sm:$0xff] %vm563, -inf
        %577 = vst.msk [vmem:[#allocation3 + $0x68] sm:$0xff] %vm563, -inf
        %578 = vst.msk [vmem:[#allocation3 + $0x70] sm:$0xff] %vm563, -inf
        %579 = vst.msk [vmem:[#allocation3 + $0x78] sm:$0xff] %vm563, -inf
        %580 = vst.msk [vmem:[#allocation4] sm:$0xff] %vm563, 0.0
        %581 = vst.msk [vmem:[#allocation4 + $0x8] sm:$0xff] %vm563, 0.0
        %582 = vst.msk [vmem:[#allocation4 + $0x10] sm:$0xff] %vm563, 0.0
        %583 = vst.msk [vmem:[#allocation4 + $0x18] sm:$0xff] %vm563, 0.0
        %584 = vst.msk [vmem:[#allocation4 + $0x20] sm:$0xff] %vm563, 0.0
        %585 = vst.msk [vmem:[#allocation4 + $0x28] sm:$0xff] %vm563, 0.0
        %586 = vst.msk [vmem:[#allocation4 + $0x30] sm:$0xff] %vm563, 0.0
        %587 = vst.msk [vmem:[#allocation4 + $0x38] sm:$0xff] %vm563, 0.0
        %588 = vst.msk [vmem:[#allocation4 + $0x40] sm:$0xff] %vm563, 0.0
        %589 = vst.msk [vmem:[#allocation4 + $0x48] sm:$0xff] %vm563, 0.0
        %590 = vst.msk [vmem:[#allocation4 + $0x50] sm:$0xff] %vm563, 0.0
        %591 = vst.msk [vmem:[#allocation4 + $0x58] sm:$0xff] %vm563, 0.0
        %592 = vst.msk [vmem:[#allocation4 + $0x60] sm:$0xff] %vm563, 0.0
        %593 = vst.msk [vmem:[#allocation4 + $0x68] sm:$0xff] %vm563, 0.0
        %594 = vst.msk [vmem:[#allocation4 + $0x70] sm:$0xff] %vm563, 0.0
        %595 = vst.msk [vmem:[#allocation4 + $0x78] sm:$0xff] %vm563, 0.0
        %596 = vst.msk [vmem:[#allocation5] sm:$0xff] %vm457, 0.0
        %597 = vst.msk [vmem:[#allocation5 + $0x8] sm:$0xff] %vm457, 0.0
        %598 = vst.msk [vmem:[#allocation5 + $0x10] sm:$0xff] %vm457, 0.0
        %599 = vst.msk [vmem:[#allocation5 + $0x18] sm:$0xff] %vm457, 0.0
        %600 = vst.msk [vmem:[#allocation5 + $0x20] sm:$0xff] %vm457, 0.0
        %601 = vst.msk [vmem:[#allocation5 + $0x28] sm:$0xff] %vm457, 0.0
        %602 = vst.msk [vmem:[#allocation5 + $0x30] sm:$0xff] %vm457, 0.0
        %603 = vst.msk [vmem:[#allocation5 + $0x38] sm:$0xff] %vm457, 0.0
        %604 = vst.msk [vmem:[#allocation5 + $0x40] sm:$0xff] %vm457, 0.0
        %605 = vst.msk [vmem:[#allocation5 + $0x48] sm:$0xff] %vm457, 0.0
        %606 = vst.msk [vmem:[#allocation5 + $0x50] sm:$0xff] %vm457, 0.0
        %607 = vst.msk [vmem:[#allocation5 + $0x58] sm:$0xff] %vm457, 0.0
        %608 = vst.msk [vmem:[#allocation5 + $0x60] sm:$0xff] %vm457, 0.0
        %609 = vst.msk [vmem:[#allocation5 + $0x68] sm:$0xff] %vm457, 0.0
        %610 = vst.msk [vmem:[#allocation5 + $0x70] sm:$0xff] %vm457, 0.0
        %611 = vst.msk [vmem:[#allocation5 + $0x78] sm:$0xff] %vm457, 0.0
      $region60: #{tpu_custom_call.1} parent=55 // pred_fallthru
        _
      %v612 = vld [vmem:[%s404] sm:$0xff]
      %v613 = vld [vmem:[%s404 + $0x8] sm:$0xff]
      %v614 = vld [vmem:[%s404 + $0x10] sm:$0xff]
      %v615 = vld [vmem:[%s404 + $0x18] sm:$0xff]
      %v616 = vld [vmem:[%s404 + $0x20] sm:$0xff]
      %v617 = vld [vmem:[%s404 + $0x28] sm:$0xff]
      %v618 = vld [vmem:[%s404 + $0x30] sm:$0xff]
      %v619 = vld [vmem:[%s404 + $0x38] sm:$0xff]
      %v620 = vld [vmem:[%s404 + $0x40] sm:$0xff]
      %v621 = vld [vmem:[%s404 + $0x48] sm:$0xff]
      %v622 = vld [vmem:[%s404 + $0x50] sm:$0xff]
      %v623 = vld [vmem:[%s404 + $0x58] sm:$0xff]
      %v624 = vld [vmem:[%s404 + $0x60] sm:$0xff]
      %v625 = vld [vmem:[%s404 + $0x68] sm:$0xff]
      %v626 = vld [vmem:[%s404 + $0x70] sm:$0xff]
      %v627 = vld [vmem:[%s404 + $0x78] sm:$0xff]
      %v628 = vpack.c.bf16 %v613, %v612
      %v629 = vpack.c.bf16 %v615, %v614
      %v630 = vpack.c.bf16 %v617, %v616
      %v631 = vpack.c.bf16 %v619, %v618
      %v632 = vpack.c.bf16 %v621, %v620
      %v633 = vpack.c.bf16 %v623, %v622
      %v634 = vpack.c.bf16 %v625, %v624
      %v635 = vpack.c.bf16 %v627, %v626
      %v636 = vld [vmem:[%s4] sm:$0xf]
      %v637 = vld [vmem:[%s4 + $0x4] sm:$0xf]
      %v638 = vld [vmem:[%s5] sm:$0x1]
      %v640 = vperm.slane %v638, 0
      %v644 = vunpack.c.l.b16 %v636
      %v645 = vunpack.c.l.b16 %v637
      %v646 = vpack.c.b16 %v645, %v644
      %vm648 = vcmask 130048
      %v650 = vsel %vm648, %v628, 0
      %v653 = vsel %vm648, %v629, 0
      %v656 = vsel %vm648, %v630, 0
      %v659 = vsel %vm648, %v631, 0
      %v662 = vsel %vm648, %v632, 0
      %v665 = vsel %vm648, %v633, 0
      %v668 = vsel %vm648, %v634, 0
      %v671 = vsel %vm648, %v635, 0
      %673 = vmatpush.bf16.msra.mxu0 0
      %674 = vmatpush.bf16.msra.mxu0 0
      %675 = vmatpush.bf16.msra.mxu0 0
      %676 = vmatpush.bf16.msra.mxu0 0
      %677 = vmatpush.bf16.msra.mxu0 0
      %678 = vmatpush.bf16.msra.mxu0 0
      %679 = vmatpush.bf16.msra.mxu0 0
      %680 = vmatpush.bf16.msra.mxu0 %v646
      %681 = vmatmul.bf16.gmra.mxu0 %v650
      %v682 = vpop.f32.mrf.mxu0
      %v683 = vadd.f32 %v640, %v682
      %v684 = vpop.f32.mrf.mxu0
      %v685 = vadd.f32 %v640, %v684
      %686 = vmatmul.bf16.gmra.mxu0 %v653
      %v687 = vpop.f32.mrf.mxu0
      %v688 = vadd.f32 %v640, %v687
      %v689 = vpop.f32.mrf.mxu0
      %v690 = vadd.f32 %v640, %v689
      %691 = vmatmul.bf16.gmra.mxu0 %v656
      %v692 = vpop.f32.mrf.mxu0
      %v693 = vadd.f32 %v640, %v692
      %v694 = vpop.f32.mrf.mxu0
      %v695 = vadd.f32 %v640, %v694
      %696 = vmatmul.bf16.gmra.mxu0 %v659
      %v697 = vpop.f32.mrf.mxu0
      %v698 = vadd.f32 %v640, %v697
      %v699 = vpop.f32.mrf.mxu0
      %v700 = vadd.f32 %v640, %v699
      %701 = vmatmul.bf16.gmra.mxu0 %v662
      %v702 = vpop.f32.mrf.mxu0
      %v703 = vadd.f32 %v640, %v702
      %v704 = vpop.f32.mrf.mxu0
      %v705 = vadd.f32 %v640, %v704
      %706 = vmatmul.bf16.gmra.mxu0 %v665
      %v707 = vpop.f32.mrf.mxu0
      %v708 = vadd.f32 %v640, %v707
      %v709 = vpop.f32.mrf.mxu0
      %v710 = vadd.f32 %v640, %v709
      %711 = vmatmul.bf16.gmra.mxu0 %v668
      %v712 = vpop.f32.mrf.mxu0
      %v713 = vadd.f32 %v640, %v712
      %v714 = vpop.f32.mrf.mxu0
      %v715 = vadd.f32 %v640, %v714
      %716 = vmatmul.bf16.gmra.mxu0 %v671
      %v717 = vpop.f32.mrf.mxu0
      %v718 = vadd.f32 %v640, %v717
      %v719 = vpop.f32.mrf.mxu0
      %v720 = vadd.f32 %v640, %v719
      %721 = vdwg.mxu0
      %v722 = vld [vmem:[%s6] sm:$0xf]
      %v723 = vld [vmem:[%s6 + $0x4] sm:$0xf]
      %v724 = vld [vmem:[%s7] sm:$0x1]
      %v726 = vperm.slane %v724, 0
      %v730 = vunpack.c.l.b16 %v722
      %v731 = vunpack.c.l.b16 %v723
      %v732 = vpack.c.b16 %v731, %v730
      %734 = vmatpush.bf16.msra.mxu0 0
      %735 = vmatpush.bf16.msra.mxu0 0
      %736 = vmatpush.bf16.msra.mxu0 0
      %737 = vmatpush.bf16.msra.mxu0 0
      %738 = vmatpush.bf16.msra.mxu0 0
      %739 = vmatpush.bf16.msra.mxu0 0
      %740 = vmatpush.bf16.msra.mxu0 0
      %741 = vmatpush.bf16.msra.mxu0 %v732
      %742 = vmatmul.bf16.gmra.mxu0 %v650
      %v743 = vpop.f32.mrf.mxu0
      %v744 = vadd.f32 %v726, %v743
      %v745 = vpop.f32.mrf.mxu0
      %v746 = vadd.f32 %v726, %v745
      %747 = vmatmul.bf16.gmra.mxu0 %v653
      %v748 = vpop.f32.mrf.mxu0
      %v749 = vadd.f32 %v726, %v748
      %v750 = vpop.f32.mrf.mxu0
      %v751 = vadd.f32 %v726, %v750
      %752 = vmatmul.bf16.gmra.mxu0 %v656
      %v753 = vpop.f32.mrf.mxu0
      %v754 = vadd.f32 %v726, %v753
      %v755 = vpop.f32.mrf.mxu0
      %v756 = vadd.f32 %v726, %v755
      %757 = vmatmul.bf16.gmra.mxu0 %v659
      %v758 = vpop.f32.mrf.mxu0
      %v759 = vadd.f32 %v726, %v758
      %v760 = vpop.f32.mrf.mxu0
      %v761 = vadd.f32 %v726, %v760
      %762 = vmatmul.bf16.gmra.mxu0 %v662
      %v763 = vpop.f32.mrf.mxu0
      %v764 = vadd.f32 %v726, %v763
      %v765 = vpop.f32.mrf.mxu0
      %v766 = vadd.f32 %v726, %v765
      %767 = vmatmul.bf16.gmra.mxu0 %v665
      %v768 = vpop.f32.mrf.mxu0
      %v769 = vadd.f32 %v726, %v768
      %v770 = vpop.f32.mrf.mxu0
      %v771 = vadd.f32 %v726, %v770
      %772 = vmatmul.bf16.gmra.mxu0 %v668
      %v773 = vpop.f32.mrf.mxu0
      %v774 = vadd.f32 %v726, %v773
      %v775 = vpop.f32.mrf.mxu0
      %v776 = vadd.f32 %v726, %v775
      %777 = vmatmul.bf16.gmra.mxu0 %v671
      %v778 = vpop.f32.mrf.mxu0
      %v779 = vadd.f32 %v726, %v778
      %v780 = vpop.f32.mrf.mxu0
      %v781 = vadd.f32 %v726, %v780
      %782 = vdwg.mxu0
      %v783 = vld [vmem:[#allocation2] sm:$0xf]
      %v784 = vld [vmem:[#allocation2 + $0x4] sm:$0xf]
      %v785 = vld [vmem:[#allocation2 + $0x8] sm:$0xf]
      %v786 = vld [vmem:[#allocation2 + $0xc] sm:$0xf]
      %v787 = vld [vmem:[#allocation2 + $0x10] sm:$0xf]
      %v788 = vld [vmem:[#allocation2 + $0x14] sm:$0xf]
      %v789 = vld [vmem:[#allocation2 + $0x18] sm:$0xf]
      %v790 = vld [vmem:[#allocation2 + $0x1c] sm:$0xf]
      %v791 = vld [vmem:[#allocation2 + $0x20] sm:$0xf]
      %v792 = vld [vmem:[#allocation2 + $0x24] sm:$0xf]
      %v793 = vld [vmem:[#allocation2 + $0x28] sm:$0xf]
      %v794 = vld [vmem:[#allocation2 + $0x2c] sm:$0xf]
      %v795 = vld [vmem:[#allocation2 + $0x30] sm:$0xf]
      %v796 = vld [vmem:[#allocation2 + $0x34] sm:$0xf]
      %v797 = vld [vmem:[#allocation2 + $0x38] sm:$0xf]
      %v798 = vld [vmem:[#allocation2 + $0x3c] sm:$0xf]
      %v799 = vpack.c.bf16 %v685, %v683
      %v800 = vpack.c.bf16 %v690, %v688
      %v801 = vpack.c.bf16 %v695, %v693
      %v802 = vpack.c.bf16 %v700, %v698
      %v803 = vpack.c.bf16 %v705, %v703
      %v804 = vpack.c.bf16 %v710, %v708
      %v805 = vpack.c.bf16 %v715, %v713
      %v806 = vpack.c.bf16 %v720, %v718
      %v823 = vunpack.c.l.b16 %v783
      %v824 = vunpack.c.l.b16 %v784
      %v825 = vunpack.c.l.b16 %v785
      %v826 = vunpack.c.l.b16 %v786
      %v827 = vunpack.c.l.b16 %v787
      %v828 = vunpack.c.l.b16 %v788
      %v829 = vunpack.c.l.b16 %v789
      %v830 = vunpack.c.l.b16 %v790
      %v831 = vunpack.c.l.b16 %v791
      %v832 = vunpack.c.l.b16 %v792
      %v833 = vunpack.c.l.b16 %v793
      %v834 = vunpack.c.l.b16 %v794
      %v835 = vunpack.c.l.b16 %v795
      %v836 = vunpack.c.l.b16 %v796
      %v837 = vunpack.c.l.b16 %v797
      %v838 = vunpack.c.l.b16 %v798
      %v839 = vpack.c.b16 %v824, %v823
      %v840 = vpack.c.b16 %v826, %v825
      %v841 = vpack.c.b16 %v828, %v827
      %v842 = vpack.c.b16 %v830, %v829
      %v843 = vpack.c.b16 %v832, %v831
      %v844 = vpack.c.b16 %v834, %v833
      %v845 = vpack.c.b16 %v836, %v835
      %v846 = vpack.c.b16 %v838, %v837
      %855 = vmatpush.bf16.xpose.msra.mxu0 %v806
      %856 = vmatpush.bf16.xpose.msra.mxu0 %v805
      %857 = vmatpush.bf16.xpose.msra.mxu0 %v804
      %858 = vmatpush.bf16.xpose.msra.mxu0 %v803
      %859 = vmatpush.bf16.xpose.msra.mxu0 %v802
      %860 = vmatpush.bf16.xpose.msra.mxu0 %v801
      %861 = vmatpush.bf16.xpose.msra.mxu0 %v800
      %862 = vmatpush.bf16.xpose.msra.mxu0 %v799
      %863 = vmatmul.bf16.gmra.mxu0 %v839
      %v864 = vpop.f32.mrf.mxu0
      %v865 = vadd.f32 0.0, %v864
      %v866 = vpop.f32.mrf.mxu0
      %v867 = vadd.f32 0.0, %v866
      %868 = vmatmul.bf16.gmra.mxu0 %v840
      %v869 = vpop.f32.mrf.mxu0
      %v870 = vadd.f32 0.0, %v869
      %v871 = vpop.f32.mrf.mxu0
      %v872 = vadd.f32 0.0, %v871
      %873 = vmatmul.bf16.gmra.mxu0 %v841
      %v874 = vpop.f32.mrf.mxu0
      %v875 = vadd.f32 0.0, %v874
      %v876 = vpop.f32.mrf.mxu0
      %v877 = vadd.f32 0.0, %v876
      %878 = vmatmul.bf16.gmra.mxu0 %v842
      %v879 = vpop.f32.mrf.mxu0
      %v880 = vadd.f32 0.0, %v879
      %v881 = vpop.f32.mrf.mxu0
      %v882 = vadd.f32 0.0, %v881
      %883 = vmatmul.bf16.gmra.mxu0 %v843
      %v884 = vpop.f32.mrf.mxu0
      %v885 = vadd.f32 0.0, %v884
      %v886 = vpop.f32.mrf.mxu0
      %v887 = vadd.f32 0.0, %v886
      %888 = vmatmul.bf16.gmra.mxu0 %v844
      %v889 = vpop.f32.mrf.mxu0
      %v890 = vadd.f32 0.0, %v889
      %v891 = vpop.f32.mrf.mxu0
      %v892 = vadd.f32 0.0, %v891
      %893 = vmatmul.bf16.gmra.mxu0 %v845
      %v894 = vpop.f32.mrf.mxu0
      %v895 = vadd.f32 0.0, %v894
      %v896 = vpop.f32.mrf.mxu0
      %v897 = vadd.f32 0.0, %v896
      %898 = vmatmul.bf16.gmra.mxu0 %v846
      %v899 = vpop.f32.mrf.mxu0
      %v900 = vadd.f32 0.0, %v899
      %v901 = vpop.f32.mrf.mxu0
      %v902 = vadd.f32 0.0, %v901
      %903 = vdwg.mxu0
      %v904 = vld [vmem:[#allocation3] sm:$0xff]
      %v905 = vld [vmem:[#allocation3 + $0x8] sm:$0xff]
      %v906 = vld [vmem:[#allocation3 + $0x10] sm:$0xff]
      %v907 = vld [vmem:[#allocation3 + $0x18] sm:$0xff]
      %v908 = vld [vmem:[#allocation3 + $0x20] sm:$0xff]
      %v909 = vld [vmem:[#allocation3 + $0x28] sm:$0xff]
      %v910 = vld [vmem:[#allocation3 + $0x30] sm:$0xff]
      %v911 = vld [vmem:[#allocation3 + $0x38] sm:$0xff]
      %v912 = vld [vmem:[#allocation3 + $0x40] sm:$0xff]
      %v913 = vld [vmem:[#allocation3 + $0x48] sm:$0xff]
      %v914 = vld [vmem:[#allocation3 + $0x50] sm:$0xff]
      %v915 = vld [vmem:[#allocation3 + $0x58] sm:$0xff]
      %v916 = vld [vmem:[#allocation3 + $0x60] sm:$0xff]
      %v917 = vld [vmem:[#allocation3 + $0x68] sm:$0xff]
      %v918 = vld [vmem:[#allocation3 + $0x70] sm:$0xff]
      %v919 = vld [vmem:[#allocation3 + $0x78] sm:$0xff]
      %920 = vmax.xlane.f32.xlu0 %v865
      %v921 = vpop.xlane.xlu0 %920
      %922 = vmax.xlane.f32.xlu0 %v867
      %v923 = vpop.xlane.xlu0 %922
      %924 = vmax.xlane.f32.xlu0 %v870
      %v925 = vpop.xlane.xlu0 %924
      %926 = vmax.xlane.f32.xlu0 %v872
      %v927 = vpop.xlane.xlu0 %926
      %928 = vmax.xlane.f32.xlu0 %v875
      %v929 = vpop.xlane.xlu0 %928
      %930 = vmax.xlane.f32.xlu0 %v877
      %v931 = vpop.xlane.xlu0 %930
      %932 = vmax.xlane.f32.xlu0 %v880
      %v933 = vpop.xlane.xlu0 %932
      %934 = vmax.xlane.f32.xlu0 %v882
      %v935 = vpop.xlane.xlu0 %934
      %936 = vmax.xlane.f32.xlu0 %v885
      %v937 = vpop.xlane.xlu0 %936
      %938 = vmax.xlane.f32.xlu0 %v887
      %v939 = vpop.xlane.xlu0 %938
      %940 = vmax.xlane.f32.xlu0 %v890
      %v941 = vpop.xlane.xlu0 %940
      %942 = vmax.xlane.f32.xlu0 %v892
      %v943 = vpop.xlane.xlu0 %942
      %944 = vmax.xlane.f32.xlu0 %v895
      %v945 = vpop.xlane.xlu0 %944
      %946 = vmax.xlane.f32.xlu0 %v897
      %v947 = vpop.xlane.xlu0 %946
      %948 = vmax.xlane.f32.xlu0 %v900
      %v949 = vpop.xlane.xlu0 %948
      %950 = vmax.xlane.f32.xlu0 %v902
      %v951 = vpop.xlane.xlu0 %950
      %v952 = vmax.f32 %v904, %v921
      %v953 = vmax.f32 %v905, %v923
      %v954 = vmax.f32 %v906, %v925
      %v955 = vmax.f32 %v907, %v927
      %v956 = vmax.f32 %v908, %v929
      %v957 = vmax.f32 %v909, %v931
      %v958 = vmax.f32 %v910, %v933
      %v959 = vmax.f32 %v911, %v935
      %v960 = vmax.f32 %v912, %v937
      %v961 = vmax.f32 %v913, %v939
      %v962 = vmax.f32 %v914, %v941
      %v963 = vmax.f32 %v915, %v943
      %v964 = vmax.f32 %v916, %v945
      %v965 = vmax.f32 %v917, %v947
      %v966 = vmax.f32 %v918, %v949
      %v967 = vmax.f32 %v919, %v951
      %v968 = vsub.f32 %v904, %v952
      %v969 = vsub.f32 %v905, %v953
      %v970 = vsub.f32 %v906, %v954
      %v971 = vsub.f32 %v907, %v955
      %v972 = vsub.f32 %v908, %v956
      %v973 = vsub.f32 %v909, %v957
      %v974 = vsub.f32 %v910, %v958
      %v975 = vsub.f32 %v911, %v959
      %v976 = vsub.f32 %v912, %v960
      %v977 = vsub.f32 %v913, %v961
      %v978 = vsub.f32 %v914, %v962
      %v979 = vsub.f32 %v915, %v963
      %v980 = vsub.f32 %v916, %v964
      %v981 = vsub.f32 %v917, %v965
      %v982 = vsub.f32 %v918, %v966
      %v983 = vsub.f32 %v919, %v967
      %v984 = vmul.f32 %v968, 1.442695
      %v985 = vpow.pop %v984
      %v986 = vmul.f32 %v969, 1.442695
      %v987 = vpow.pop %v986
      %v988 = vmul.f32 %v970, 1.442695
      %v989 = vpow.pop %v988
      %v990 = vmul.f32 %v971, 1.442695
      %v991 = vpow.pop %v990
      %v992 = vmul.f32 %v972, 1.442695
      %v993 = vpow.pop %v992
      %v994 = vmul.f32 %v973, 1.442695
      %v995 = vpow.pop %v994
      %v996 = vmul.f32 %v974, 1.442695
      %v997 = vpow.pop %v996
      %v998 = vmul.f32 %v975, 1.442695
      %v999 = vpow.pop %v998
      %v1000 = vmul.f32 %v976, 1.442695
      %v1001 = vpow.pop %v1000
      %v1002 = vmul.f32 %v977, 1.442695
      %v1003 = vpow.pop %v1002
      %v1004 = vmul.f32 %v978, 1.442695
      %v1005 = vpow.pop %v1004
      %v1006 = vmul.f32 %v979, 1.442695
      %v1007 = vpow.pop %v1006
      %v1008 = vmul.f32 %v980, 1.442695
      %v1009 = vpow.pop %v1008
      %v1010 = vmul.f32 %v981, 1.442695
      %v1011 = vpow.pop %v1010
      %v1012 = vmul.f32 %v982, 1.442695
      %v1013 = vpow.pop %v1012
      %v1014 = vmul.f32 %v983, 1.442695
      %v1015 = vpow.pop %v1014
      %1017 = vset.pattern.permute.xlu0 0
      %1018 = vperm.xlu0 %1017, %v952
      %v1019 = vpop.permute.xlu0 %1018
      %1022 = vset.pattern.permute.xlu0 0
      %1023 = vperm.xlu0 %1022, %v953
      %v1024 = vpop.permute.xlu0 %1023
      %1027 = vset.pattern.permute.xlu0 0
      %1028 = vperm.xlu0 %1027, %v954
      %v1029 = vpop.permute.xlu0 %1028
      %1032 = vset.pattern.permute.xlu0 0
      %1033 = vperm.xlu0 %1032, %v955
      %v1034 = vpop.permute.xlu0 %1033
      %1037 = vset.pattern.permute.xlu0 0
      %1038 = vperm.xlu0 %1037, %v956
      %v1039 = vpop.permute.xlu0 %1038
      %1042 = vset.pattern.permute.xlu0 0
      %1043 = vperm.xlu0 %1042, %v957
      %v1044 = vpop.permute.xlu0 %1043
      %1047 = vset.pattern.permute.xlu0 0
      %1048 = vperm.xlu0 %1047, %v958
      %v1049 = vpop.permute.xlu0 %1048
      %1052 = vset.pattern.permute.xlu0 0
      %1053 = vperm.xlu0 %1052, %v959
      %v1054 = vpop.permute.xlu0 %1053
      %1057 = vset.pattern.permute.xlu0 0
      %1058 = vperm.xlu0 %1057, %v960
      %v1059 = vpop.permute.xlu0 %1058
      %1062 = vset.pattern.permute.xlu0 0
      %1063 = vperm.xlu0 %1062, %v961
      %v1064 = vpop.permute.xlu0 %1063
      %1067 = vset.pattern.permute.xlu0 0
      %1068 = vperm.xlu0 %1067, %v962
      %v1069 = vpop.permute.xlu0 %1068
      %1072 = vset.pattern.permute.xlu0 0
      %1073 = vperm.xlu0 %1072, %v963
      %v1074 = vpop.permute.xlu0 %1073
      %1077 = vset.pattern.permute.xlu0 0
      %1078 = vperm.xlu0 %1077, %v964
      %v1079 = vpop.permute.xlu0 %1078
      %1082 = vset.pattern.permute.xlu0 0
      %1083 = vperm.xlu0 %1082, %v965
      %v1084 = vpop.permute.xlu0 %1083
      %1087 = vset.pattern.permute.xlu0 0
      %1088 = vperm.xlu0 %1087, %v966
      %v1089 = vpop.permute.xlu0 %1088
      %1092 = vset.pattern.permute.xlu0 0
      %1093 = vperm.xlu0 %1092, %v967
      %v1094 = vpop.permute.xlu0 %1093
      %v1096 = vsub.f32 %v865, %v1019
      %v1097 = vsub.f32 %v867, %v1024
      %v1098 = vsub.f32 %v870, %v1029
      %v1099 = vsub.f32 %v872, %v1034
      %v1100 = vsub.f32 %v875, %v1039
      %v1101 = vsub.f32 %v877, %v1044
      %v1102 = vsub.f32 %v880, %v1049
      %v1103 = vsub.f32 %v882, %v1054
      %v1104 = vsub.f32 %v885, %v1059
      %v1105 = vsub.f32 %v887, %v1064
      %v1106 = vsub.f32 %v890, %v1069
      %v1107 = vsub.f32 %v892, %v1074
      %v1108 = vsub.f32 %v895, %v1079
      %v1109 = vsub.f32 %v897, %v1084
      %v1110 = vsub.f32 %v900, %v1089
      %v1111 = vsub.f32 %v902, %v1094
      %v1112 = vmul.f32 %v1096, 1.442695
      %v1113 = vpow.pop %v1112
      %v1114 = vmul.f32 %v1097, 1.442695
      %v1115 = vpow.pop %v1114
      %v1116 = vmul.f32 %v1098, 1.442695
      %v1117 = vpow.pop %v1116
      %v1118 = vmul.f32 %v1099, 1.442695
      %v1119 = vpow.pop %v1118
      %v1120 = vmul.f32 %v1100, 1.442695
      %v1121 = vpow.pop %v1120
      %v1122 = vmul.f32 %v1101, 1.442695
      %v1123 = vpow.pop %v1122
      %v1124 = vmul.f32 %v1102, 1.442695
      %v1125 = vpow.pop %v1124
      %v1126 = vmul.f32 %v1103, 1.442695
      %v1127 = vpow.pop %v1126
      %v1128 = vmul.f32 %v1104, 1.442695
      %v1129 = vpow.pop %v1128
      %v1130 = vmul.f32 %v1105, 1.442695
      %v1131 = vpow.pop %v1130
      %v1132 = vmul.f32 %v1106, 1.442695
      %v1133 = vpow.pop %v1132
      %v1134 = vmul.f32 %v1107, 1.442695
      %v1135 = vpow.pop %v1134
      %v1136 = vmul.f32 %v1108, 1.442695
      %v1137 = vpow.pop %v1136
      %v1138 = vmul.f32 %v1109, 1.442695
      %v1139 = vpow.pop %v1138
      %v1140 = vmul.f32 %v1110, 1.442695
      %v1141 = vpow.pop %v1140
      %v1142 = vmul.f32 %v1111, 1.442695
      %v1143 = vpow.pop %v1142
      %v1144 = vld [vmem:[#allocation4] sm:$0xff]
      %v1145 = vld [vmem:[#allocation4 + $0x8] sm:$0xff]
      %v1146 = vld [vmem:[#allocation4 + $0x10] sm:$0xff]
      %v1147 = vld [vmem:[#allocation4 + $0x18] sm:$0xff]
      %v1148 = vld [vmem:[#allocation4 + $0x20] sm:$0xff]
      %v1149 = vld [vmem:[#allocation4 + $0x28] sm:$0xff]
      %v1150 = vld [vmem:[#allocation4 + $0x30] sm:$0xff]
      %v1151 = vld [vmem:[#allocation4 + $0x38] sm:$0xff]
      %v1152 = vld [vmem:[#allocation4 + $0x40] sm:$0xff]
      %v1153 = vld [vmem:[#allocation4 + $0x48] sm:$0xff]
      %v1154 = vld [vmem:[#allocation4 + $0x50] sm:$0xff]
      %v1155 = vld [vmem:[#allocation4 + $0x58] sm:$0xff]
      %v1156 = vld [vmem:[#allocation4 + $0x60] sm:$0xff]
      %v1157 = vld [vmem:[#allocation4 + $0x68] sm:$0xff]
      %v1158 = vld [vmem:[#allocation4 + $0x70] sm:$0xff]
      %v1159 = vld [vmem:[#allocation4 + $0x78] sm:$0xff]
      %v1160 = vmul.f32 %v985, %v1144
      %v1161 = vmul.f32 %v987, %v1145
      %v1162 = vmul.f32 %v989, %v1146
      %v1163 = vmul.f32 %v991, %v1147
      %v1164 = vmul.f32 %v993, %v1148
      %v1165 = vmul.f32 %v995, %v1149
      %v1166 = vmul.f32 %v997, %v1150
      %v1167 = vmul.f32 %v999, %v1151
      %v1168 = vmul.f32 %v1001, %v1152
      %v1169 = vmul.f32 %v1003, %v1153
      %v1170 = vmul.f32 %v1005, %v1154
      %v1171 = vmul.f32 %v1007, %v1155
      %v1172 = vmul.f32 %v1009, %v1156
      %v1173 = vmul.f32 %v1011, %v1157
      %v1174 = vmul.f32 %v1013, %v1158
      %v1175 = vmul.f32 %v1015, %v1159
      %1176 = vadd.xlane.f32.xlu0 %v1113
      %v1177 = vpop.xlane.xlu0 %1176
      %1178 = vadd.xlane.f32.xlu0 %v1115
      %v1179 = vpop.xlane.xlu0 %1178
      %1180 = vadd.xlane.f32.xlu0 %v1117
      %v1181 = vpop.xlane.xlu0 %1180
      %1182 = vadd.xlane.f32.xlu0 %v1119
      %v1183 = vpop.xlane.xlu0 %1182
      %1184 = vadd.xlane.f32.xlu0 %v1121
      %v1185 = vpop.xlane.xlu0 %1184
      %1186 = vadd.xlane.f32.xlu0 %v1123
      %v1187 = vpop.xlane.xlu0 %1186
      %1188 = vadd.xlane.f32.xlu0 %v1125
      %v1189 = vpop.xlane.xlu0 %1188
      %1190 = vadd.xlane.f32.xlu0 %v1127
      %v1191 = vpop.xlane.xlu0 %1190
      %1192 = vadd.xlane.f32.xlu0 %v1129
      %v1193 = vpop.xlane.xlu0 %1192
      %1194 = vadd.xlane.f32.xlu0 %v1131
      %v1195 = vpop.xlane.xlu0 %1194
      %1196 = vadd.xlane.f32.xlu0 %v1133
      %v1197 = vpop.xlane.xlu0 %1196
      %1198 = vadd.xlane.f32.xlu0 %v1135
      %v1199 = vpop.xlane.xlu0 %1198
      %1200 = vadd.xlane.f32.xlu0 %v1137
      %v1201 = vpop.xlane.xlu0 %1200
      %1202 = vadd.xlane.f32.xlu0 %v1139
      %v1203 = vpop.xlane.xlu0 %1202
      %1204 = vadd.xlane.f32.xlu0 %v1141
      %v1205 = vpop.xlane.xlu0 %1204
      %1206 = vadd.xlane.f32.xlu0 %v1143
      %v1207 = vpop.xlane.xlu0 %1206
      %v1208 = vadd.f32 %v1160, %v1177
      %v1209 = vadd.f32 %v1161, %v1179
      %v1210 = vadd.f32 %v1162, %v1181
      %v1211 = vadd.f32 %v1163, %v1183
      %v1212 = vadd.f32 %v1164, %v1185
      %v1213 = vadd.f32 %v1165, %v1187
      %v1214 = vadd.f32 %v1166, %v1189
      %v1215 = vadd.f32 %v1167, %v1191
      %v1216 = vadd.f32 %v1168, %v1193
      %v1217 = vadd.f32 %v1169, %v1195
      %v1218 = vadd.f32 %v1170, %v1197
      %v1219 = vadd.f32 %v1171, %v1199
      %v1220 = vadd.f32 %v1172, %v1201
      %v1221 = vadd.f32 %v1173, %v1203
      %v1222 = vadd.f32 %v1174, %v1205
      %v1223 = vadd.f32 %v1175, %v1207
      %vm1224 = vcmask 7168
      %1225 = vst.msk [vmem:[#allocation4] sm:$0xff] %vm1224, %v1208
      %1226 = vst.msk [vmem:[#allocation4 + $0x8] sm:$0xff] %vm1224, %v1209
      %1227 = vst.msk [vmem:[#allocation4 + $0x10] sm:$0xff] %vm1224, %v1210
      %1228 = vst.msk [vmem:[#allocation4 + $0x18] sm:$0xff] %vm1224, %v1211
      %1229 = vst.msk [vmem:[#allocation4 + $0x20] sm:$0xff] %vm1224, %v1212
      %1230 = vst.msk [vmem:[#allocation4 + $0x28] sm:$0xff] %vm1224, %v1213
      %1231 = vst.msk [vmem:[#allocation4 + $0x30] sm:$0xff] %vm1224, %v1214
      %1232 = vst.msk [vmem:[#allocation4 + $0x38] sm:$0xff] %vm1224, %v1215
      %1233 = vst.msk [vmem:[#allocation4 + $0x40] sm:$0xff] %vm1224, %v1216
      %1234 = vst.msk [vmem:[#allocation4 + $0x48] sm:$0xff] %vm1224, %v1217
      %1235 = vst.msk [vmem:[#allocation4 + $0x50] sm:$0xff] %vm1224, %v1218
      %1236 = vst.msk [vmem:[#allocation4 + $0x58] sm:$0xff] %vm1224, %v1219
      %1237 = vst.msk [vmem:[#allocation4 + $0x60] sm:$0xff] %vm1224, %v1220
      %1238 = vst.msk [vmem:[#allocation4 + $0x68] sm:$0xff] %vm1224, %v1221
      %1239 = vst.msk [vmem:[#allocation4 + $0x70] sm:$0xff] %vm1224, %v1222
      %1240 = vst.msk [vmem:[#allocation4 + $0x78] sm:$0xff] %vm1224, %v1223
      %v1241 = vld [vmem:[#allocation5] sm:$0xff]
      %v1242 = vld [vmem:[#allocation5 + $0x8] sm:$0xff]
      %v1243 = vld [vmem:[#allocation5 + $0x10] sm:$0xff]
      %v1244 = vld [vmem:[#allocation5 + $0x18] sm:$0xff]
      %v1245 = vld [vmem:[#allocation5 + $0x20] sm:$0xff]
      %v1246 = vld [vmem:[#allocation5 + $0x28] sm:$0xff]
      %v1247 = vld [vmem:[#allocation5 + $0x30] sm:$0xff]
      %v1248 = vld [vmem:[#allocation5 + $0x38] sm:$0xff]
      %v1249 = vld [vmem:[#allocation5 + $0x40] sm:$0xff]
      %v1250 = vld [vmem:[#allocation5 + $0x48] sm:$0xff]
      %v1251 = vld [vmem:[#allocation5 + $0x50] sm:$0xff]
      %v1252 = vld [vmem:[#allocation5 + $0x58] sm:$0xff]
      %v1253 = vld [vmem:[#allocation5 + $0x60] sm:$0xff]
      %v1254 = vld [vmem:[#allocation5 + $0x68] sm:$0xff]
      %v1255 = vld [vmem:[#allocation5 + $0x70] sm:$0xff]
      %v1256 = vld [vmem:[#allocation5 + $0x78] sm:$0xff]
      %1258 = vset.pattern.permute.xlu0 0
      %1259 = vperm.xlu0 %1258, %v985
      %v1260 = vpop.permute.xlu0 %1259
      %1263 = vset.pattern.permute.xlu0 0
      %1264 = vperm.xlu0 %1263, %v987
      %v1265 = vpop.permute.xlu0 %1264
      %1268 = vset.pattern.permute.xlu0 0
      %1269 = vperm.xlu0 %1268, %v989
      %v1270 = vpop.permute.xlu0 %1269
      %1273 = vset.pattern.permute.xlu0 0
      %1274 = vperm.xlu0 %1273, %v991
      %v1275 = vpop.permute.xlu0 %1274
      %1278 = vset.pattern.permute.xlu0 0
      %1279 = vperm.xlu0 %1278, %v993
      %v1280 = vpop.permute.xlu0 %1279
      %1283 = vset.pattern.permute.xlu0 0
      %1284 = vperm.xlu0 %1283, %v995
      %v1285 = vpop.permute.xlu0 %1284
      %1288 = vset.pattern.permute.xlu0 0
      %1289 = vperm.xlu0 %1288, %v997
      %v1290 = vpop.permute.xlu0 %1289
      %1293 = vset.pattern.permute.xlu0 0
      %1294 = vperm.xlu0 %1293, %v999
      %v1295 = vpop.permute.xlu0 %1294
      %1298 = vset.pattern.permute.xlu0 0
      %1299 = vperm.xlu0 %1298, %v1001
      %v1300 = vpop.permute.xlu0 %1299
      %1303 = vset.pattern.permute.xlu0 0
      %1304 = vperm.xlu0 %1303, %v1003
      %v1305 = vpop.permute.xlu0 %1304
      %1308 = vset.pattern.permute.xlu0 0
      %1309 = vperm.xlu0 %1308, %v1005
      %v1310 = vpop.permute.xlu0 %1309
      %1313 = vset.pattern.permute.xlu0 0
      %1314 = vperm.xlu0 %1313, %v1007
      %v1315 = vpop.permute.xlu0 %1314
      %1318 = vset.pattern.permute.xlu0 0
      %1319 = vperm.xlu0 %1318, %v1009
      %v1320 = vpop.permute.xlu0 %1319
      %1323 = vset.pattern.permute.xlu0 0
      %1324 = vperm.xlu0 %1323, %v1011
      %v1325 = vpop.permute.xlu0 %1324
      %1328 = vset.pattern.permute.xlu0 0
      %1329 = vperm.xlu0 %1328, %v1013
      %v1330 = vpop.permute.xlu0 %1329
      %1333 = vset.pattern.permute.xlu0 0
      %1334 = vperm.xlu0 %1333, %v1015
      %v1335 = vpop.permute.xlu0 %1334
      %v1337 = vmul.f32 %v1260, %v1241
      %v1338 = vmul.f32 %v1265, %v1242
      %v1339 = vmul.f32 %v1270, %v1243
      %v1340 = vmul.f32 %v1275, %v1244
      %v1341 = vmul.f32 %v1280, %v1245
      %v1342 = vmul.f32 %v1285, %v1246
      %v1343 = vmul.f32 %v1290, %v1247
      %v1344 = vmul.f32 %v1295, %v1248
      %v1345 = vmul.f32 %v1300, %v1249
      %v1346 = vmul.f32 %v1305, %v1250
      %v1347 = vmul.f32 %v1310, %v1251
      %v1348 = vmul.f32 %v1315, %v1252
      %v1349 = vmul.f32 %v1320, %v1253
      %v1350 = vmul.f32 %v1325, %v1254
      %v1351 = vmul.f32 %v1330, %v1255
      %v1352 = vmul.f32 %v1335, %v1256
      %v1353 = vpack.c.bf16 %v1115, %v1113
      %v1354 = vpack.c.bf16 %v1119, %v1117
      %v1355 = vpack.c.bf16 %v1123, %v1121
      %v1356 = vpack.c.bf16 %v1127, %v1125
      %v1357 = vpack.c.bf16 %v1131, %v1129
      %v1358 = vpack.c.bf16 %v1135, %v1133
      %v1359 = vpack.c.bf16 %v1139, %v1137
      %v1360 = vpack.c.bf16 %v1143, %v1141
      %v1361 = vpack.c.bf16 %v746, %v744
      %v1362 = vpack.c.bf16 %v751, %v749
      %v1363 = vpack.c.bf16 %v756, %v754
      %v1364 = vpack.c.bf16 %v761, %v759
      %v1365 = vpack.c.bf16 %v766, %v764
      %v1366 = vpack.c.bf16 %v771, %v769
      %v1367 = vpack.c.bf16 %v776, %v774
      %v1368 = vpack.c.bf16 %v781, %v779
      %1369 = vmatpush.bf16.msra.mxu0 %v1368
      %1370 = vmatpush.bf16.msra.mxu0 %v1367
      %1371 = vmatpush.bf16.msra.mxu0 %v1366
      %1372 = vmatpush.bf16.msra.mxu0 %v1365
      %1373 = vmatpush.bf16.msra.mxu0 %v1364
      %1374 = vmatpush.bf16.msra.mxu0 %v1363
      %1375 = vmatpush.bf16.msra.mxu0 %v1362
      %1376 = vmatpush.bf16.msra.mxu0 %v1361
      %1377 = vmatmul.bf16.gmra.mxu0 %v1353
      %v1378 = vpop.f32.mrf.mxu0
      %v1379 = vadd.f32 0.0, %v1378
      %v1380 = vpop.f32.mrf.mxu0
      %v1381 = vadd.f32 0.0, %v1380
      %1382 = vmatmul.bf16.gmra.mxu0 %v1354
      %v1383 = vpop.f32.mrf.mxu0
      %v1384 = vadd.f32 0.0, %v1383
      %v1385 = vpop.f32.mrf.mxu0
      %v1386 = vadd.f32 0.0, %v1385
      %1387 = vmatmul.bf16.gmra.mxu0 %v1355
      %v1388 = vpop.f32.mrf.mxu0
      %v1389 = vadd.f32 0.0, %v1388
      %v1390 = vpop.f32.mrf.mxu0
      %v1391 = vadd.f32 0.0, %v1390
      %1392 = vmatmul.bf16.gmra.mxu0 %v1356
      %v1393 = vpop.f32.mrf.mxu0
      %v1394 = vadd.f32 0.0, %v1393
      %v1395 = vpop.f32.mrf.mxu0
      %v1396 = vadd.f32 0.0, %v1395
      %1397 = vmatmul.bf16.gmra.mxu0 %v1357
      %v1398 = vpop.f32.mrf.mxu0
      %v1399 = vadd.f32 0.0, %v1398
      %v1400 = vpop.f32.mrf.mxu0
      %v1401 = vadd.f32 0.0, %v1400
      %1402 = vmatmul.bf16.gmra.mxu0 %v1358
      %v1403 = vpop.f32.mrf.mxu0
      %v1404 = vadd.f32 0.0, %v1403
      %v1405 = vpop.f32.mrf.mxu0
      %v1406 = vadd.f32 0.0, %v1405
      %1407 = vmatmul.bf16.gmra.mxu0 %v1359
      %v1408 = vpop.f32.mrf.mxu0
      %v1409 = vadd.f32 0.0, %v1408
      %v1410 = vpop.f32.mrf.mxu0
      %v1411 = vadd.f32 0.0, %v1410
      %1412 = vmatmul.bf16.gmra.mxu0 %v1360
      %v1413 = vpop.f32.mrf.mxu0
      %v1414 = vadd.f32 0.0, %v1413
      %v1415 = vpop.f32.mrf.mxu0
      %v1416 = vadd.f32 0.0, %v1415
      %1417 = vdwg.mxu0
      %v1418 = vadd.f32 %v1337, %v1379
      %v1419 = vadd.f32 %v1338, %v1381
      %v1420 = vadd.f32 %v1339, %v1384
      %v1421 = vadd.f32 %v1340, %v1386
      %v1422 = vadd.f32 %v1341, %v1389
      %v1423 = vadd.f32 %v1342, %v1391
      %v1424 = vadd.f32 %v1343, %v1394
      %v1425 = vadd.f32 %v1344, %v1396
      %v1426 = vadd.f32 %v1345, %v1399
      %v1427 = vadd.f32 %v1346, %v1401
      %v1428 = vadd.f32 %v1347, %v1404
      %v1429 = vadd.f32 %v1348, %v1406
      %v1430 = vadd.f32 %v1349, %v1409
      %v1431 = vadd.f32 %v1350, %v1411
      %v1432 = vadd.f32 %v1351, %v1414
      %v1433 = vadd.f32 %v1352, %v1416
      %1434 = vst.msk [vmem:[#allocation5] sm:$0xff] %vm648, %v1418
      %1435 = vst.msk [vmem:[#allocation5 + $0x8] sm:$0xff] %vm648, %v1419
      %1436 = vst.msk [vmem:[#allocation5 + $0x10] sm:$0xff] %vm648, %v1420
      %1437 = vst.msk [vmem:[#allocation5 + $0x18] sm:$0xff] %vm648, %v1421
      %1438 = vst.msk [vmem:[#allocation5 + $0x20] sm:$0xff] %vm648, %v1422
      %1439 = vst.msk [vmem:[#allocation5 + $0x28] sm:$0xff] %vm648, %v1423
      %1440 = vst.msk [vmem:[#allocation5 + $0x30] sm:$0xff] %vm648, %v1424
      %1441 = vst.msk [vmem:[#allocation5 + $0x38] sm:$0xff] %vm648, %v1425
      %1442 = vst.msk [vmem:[#allocation5 + $0x40] sm:$0xff] %vm648, %v1426
      %1443 = vst.msk [vmem:[#allocation5 + $0x48] sm:$0xff] %vm648, %v1427
      %1444 = vst.msk [vmem:[#allocation5 + $0x50] sm:$0xff] %vm648, %v1428
      %1445 = vst.msk [vmem:[#allocation5 + $0x58] sm:$0xff] %vm648, %v1429
      %1446 = vst.msk [vmem:[#allocation5 + $0x60] sm:$0xff] %vm648, %v1430
      %1447 = vst.msk [vmem:[#allocation5 + $0x68] sm:$0xff] %vm648, %v1431
      %1448 = vst.msk [vmem:[#allocation5 + $0x70] sm:$0xff] %vm648, %v1432
      %1449 = vst.msk [vmem:[#allocation5 + $0x78] sm:$0xff] %vm648, %v1433
      %1450 = vst.msk [vmem:[#allocation3] sm:$0xff] %vm1224, %v952
      %1451 = vst.msk [vmem:[#allocation3 + $0x8] sm:$0xff] %vm1224, %v953
      %1452 = vst.msk [vmem:[#allocation3 + $0x10] sm:$0xff] %vm1224, %v954
      %1453 = vst.msk [vmem:[#allocation3 + $0x18] sm:$0xff] %vm1224, %v955
      %1454 = vst.msk [vmem:[#allocation3 + $0x20] sm:$0xff] %vm1224, %v956
      %1455 = vst.msk [vmem:[#allocation3 + $0x28] sm:$0xff] %vm1224, %v957
      %1456 = vst.msk [vmem:[#allocation3 + $0x30] sm:$0xff] %vm1224, %v958
      %1457 = vst.msk [vmem:[#allocation3 + $0x38] sm:$0xff] %vm1224, %v959
      %1458 = vst.msk [vmem:[#allocation3 + $0x40] sm:$0xff] %vm1224, %v960
      %1459 = vst.msk [vmem:[#allocation3 + $0x48] sm:$0xff] %vm1224, %v961
      %1460 = vst.msk [vmem:[#allocation3 + $0x50] sm:$0xff] %vm1224, %v962
      %1461 = vst.msk [vmem:[#allocation3 + $0x58] sm:$0xff] %vm1224, %v963
      %1462 = vst.msk [vmem:[#allocation3 + $0x60] sm:$0xff] %vm1224, %v964
      %1463 = vst.msk [vmem:[#allocation3 + $0x68] sm:$0xff] %vm1224, %v965
      %1464 = vst.msk [vmem:[#allocation3 + $0x70] sm:$0xff] %vm1224, %v966
      %1465 = vst.msk [vmem:[#allocation3 + $0x78] sm:$0xff] %vm1224, %v967
      %p1466 = scmp.eq.s32.totalorder %s28, 1
      // Predicated region
      $region61: #{tpu_custom_call.1} parent=55 // pred_check
        %p1467 = pneg %p1466
      $region62: #{tpu_custom_call.1} parent=55 // pred_check_branch
        %1469 = sbr.rel (%p1467) target = $region64
      $region63: #{tpu_custom_call.1} parent=55 // pred_region
        %s1470 = sld [smem:[#allocation6]]
        %v1471 = vld [vmem:[#allocation4] sm:$0xff]
        %v1472 = vld [vmem:[#allocation4 + $0x8] sm:$0xff]
        %v1473 = vld [vmem:[#allocation4 + $0x10] sm:$0xff]
        %v1474 = vld [vmem:[#allocation4 + $0x18] sm:$0xff]
        %v1475 = vld [vmem:[#allocation4 + $0x20] sm:$0xff]
        %v1476 = vld [vmem:[#allocation4 + $0x28] sm:$0xff]
        %v1477 = vld [vmem:[#allocation4 + $0x30] sm:$0xff]
        %v1478 = vld [vmem:[#allocation4 + $0x38] sm:$0xff]
        %v1479 = vld [vmem:[#allocation4 + $0x40] sm:$0xff]
        %v1480 = vld [vmem:[#allocation4 + $0x48] sm:$0xff]
        %v1481 = vld [vmem:[#allocation4 + $0x50] sm:$0xff]
        %v1482 = vld [vmem:[#allocation4 + $0x58] sm:$0xff]
        %v1483 = vld [vmem:[#allocation4 + $0x60] sm:$0xff]
        %v1484 = vld [vmem:[#allocation4 + $0x68] sm:$0xff]
        %v1485 = vld [vmem:[#allocation4 + $0x70] sm:$0xff]
        %v1486 = vld [vmem:[#allocation4 + $0x78] sm:$0xff]
        %v1487 = vrcp.pop %v1471
        %v1488 = vrcp.pop %v1472
        %v1489 = vrcp.pop %v1473
        %v1490 = vrcp.pop %v1474
        %v1491 = vrcp.pop %v1475
        %v1492 = vrcp.pop %v1476
        %v1493 = vrcp.pop %v1477
        %v1494 = vrcp.pop %v1478
        %v1495 = vrcp.pop %v1479
        %v1496 = vrcp.pop %v1480
        %v1497 = vrcp.pop %v1481
        %v1498 = vrcp.pop %v1482
        %v1499 = vrcp.pop %v1483
        %v1500 = vrcp.pop %v1484
        %v1501 = vrcp.pop %v1485
        %v1502 = vrcp.pop %v1486
        %v1503 = vld [vmem:[#allocation5] sm:$0xff]
        %v1504 = vld [vmem:[#allocation5 + $0x8] sm:$0xff]
        %v1505 = vld [vmem:[#allocation5 + $0x10] sm:$0xff]
        %v1506 = vld [vmem:[#allocation5 + $0x18] sm:$0xff]
        %v1507 = vld [vmem:[#allocation5 + $0x20] sm:$0xff]
        %v1508 = vld [vmem:[#allocation5 + $0x28] sm:$0xff]
        %v1509 = vld [vmem:[#allocation5 + $0x30] sm:$0xff]
        %v1510 = vld [vmem:[#allocation5 + $0x38] sm:$0xff]
        %v1511 = vld [vmem:[#allocation5 + $0x40] sm:$0xff]
        %v1512 = vld [vmem:[#allocation5 + $0x48] sm:$0xff]
        %v1513 = vld [vmem:[#allocation5 + $0x50] sm:$0xff]
        %v1514 = vld [vmem:[#allocation5 + $0x58] sm:$0xff]
        %v1515 = vld [vmem:[#allocation5 + $0x60] sm:$0xff]
        %v1516 = vld [vmem:[#allocation5 + $0x68] sm:$0xff]
        %v1517 = vld [vmem:[#allocation5 + $0x70] sm:$0xff]
        %v1518 = vld [vmem:[#allocation5 + $0x78] sm:$0xff]
        %1520 = vset.pattern.permute.xlu0 0
        %1521 = vperm.xlu0 %1520, %v1487
        %v1522 = vpop.permute.xlu0 %1521
        %1525 = vset.pattern.permute.xlu0 0
        %1526 = vperm.xlu0 %1525, %v1488
        %v1527 = vpop.permute.xlu0 %1526
        %1530 = vset.pattern.permute.xlu0 0
        %1531 = vperm.xlu0 %1530, %v1489
        %v1532 = vpop.permute.xlu0 %1531
        %1535 = vset.pattern.permute.xlu0 0
        %1536 = vperm.xlu0 %1535, %v1490
        %v1537 = vpop.permute.xlu0 %1536
        %1540 = vset.pattern.permute.xlu0 0
        %1541 = vperm.xlu0 %1540, %v1491
        %v1542 = vpop.permute.xlu0 %1541
        %1545 = vset.pattern.permute.xlu0 0
        %1546 = vperm.xlu0 %1545, %v1492
        %v1547 = vpop.permute.xlu0 %1546
        %1550 = vset.pattern.permute.xlu0 0
        %1551 = vperm.xlu0 %1550, %v1493
        %v1552 = vpop.permute.xlu0 %1551
        %1555 = vset.pattern.permute.xlu0 0
        %1556 = vperm.xlu0 %1555, %v1494
        %v1557 = vpop.permute.xlu0 %1556
        %1560 = vset.pattern.permute.xlu0 0
        %1561 = vperm.xlu0 %1560, %v1495
        %v1562 = vpop.permute.xlu0 %1561
        %1565 = vset.pattern.permute.xlu0 0
        %1566 = vperm.xlu0 %1565, %v1496
        %v1567 = vpop.permute.xlu0 %1566
        %1570 = vset.pattern.permute.xlu0 0
        %1571 = vperm.xlu0 %1570, %v1497
        %v1572 = vpop.permute.xlu0 %1571
        %1575 = vset.pattern.permute.xlu0 0
        %1576 = vperm.xlu0 %1575, %v1498
        %v1577 = vpop.permute.xlu0 %1576
        %1580 = vset.pattern.permute.xlu0 0
        %1581 = vperm.xlu0 %1580, %v1499
        %v1582 = vpop.permute.xlu0 %1581
        %1585 = vset.pattern.permute.xlu0 0
        %1586 = vperm.xlu0 %1585, %v1500
        %v1587 = vpop.permute.xlu0 %1586
        %1590 = vset.pattern.permute.xlu0 0
        %1591 = vperm.xlu0 %1590, %v1501
        %v1592 = vpop.permute.xlu0 %1591
        %1595 = vset.pattern.permute.xlu0 0
        %1596 = vperm.xlu0 %1595, %v1502
        %v1597 = vpop.permute.xlu0 %1596
        %v1599 = vmul.f32 %v1503, %v1522
        %v1600 = vmul.f32 %v1504, %v1527
        %v1601 = vmul.f32 %v1505, %v1532
        %v1602 = vmul.f32 %v1506, %v1537
        %v1603 = vmul.f32 %v1507, %v1542
        %v1604 = vmul.f32 %v1508, %v1547
        %v1605 = vmul.f32 %v1509, %v1552
        %v1606 = vmul.f32 %v1510, %v1557
        %v1607 = vmul.f32 %v1511, %v1562
        %v1608 = vmul.f32 %v1512, %v1567
        %v1609 = vmul.f32 %v1513, %v1572
        %v1610 = vmul.f32 %v1514, %v1577
        %v1611 = vmul.f32 %v1515, %v1582
        %v1612 = vmul.f32 %v1516, %v1587
        %v1613 = vmul.f32 %v1517, %v1592
        %v1614 = vmul.f32 %v1518, %v1597
        %v1615 = vstv %s1470
        %v1616 = vmul.f32 %v1615, %v1599
        %v1617 = vmul.f32 %v1615, %v1600
        %v1618 = vmul.f32 %v1615, %v1601
        %v1619 = vmul.f32 %v1615, %v1602
        %v1620 = vmul.f32 %v1615, %v1603
        %v1621 = vmul.f32 %v1615, %v1604
        %v1622 = vmul.f32 %v1615, %v1605
        %v1623 = vmul.f32 %v1615, %v1606
        %v1624 = vmul.f32 %v1615, %v1607
        %v1625 = vmul.f32 %v1615, %v1608
        %v1626 = vmul.f32 %v1615, %v1609
        %v1627 = vmul.f32 %v1615, %v1610
        %v1628 = vmul.f32 %v1615, %v1611
        %v1629 = vmul.f32 %v1615, %v1612
        %v1630 = vmul.f32 %v1615, %v1613
        %v1631 = vmul.f32 %v1615, %v1614
        %v1632 = vld [vmem:[%s394] sm:$0xff]
        %v1633 = vld [vmem:[%s394 + $0x8] sm:$0xff]
        %v1634 = vld [vmem:[%s394 + $0x10] sm:$0xff]
        %v1635 = vld [vmem:[%s394 + $0x18] sm:$0xff]
        %v1636 = vld [vmem:[%s394 + $0x20] sm:$0xff]
        %v1637 = vld [vmem:[%s394 + $0x28] sm:$0xff]
        %v1638 = vld [vmem:[%s394 + $0x30] sm:$0xff]
        %v1639 = vld [vmem:[%s394 + $0x38] sm:$0xff]
        %v1640 = vld [vmem:[%s394 + $0x40] sm:$0xff]
        %v1641 = vld [vmem:[%s394 + $0x48] sm:$0xff]
        %v1642 = vld [vmem:[%s394 + $0x50] sm:$0xff]
        %v1643 = vld [vmem:[%s394 + $0x58] sm:$0xff]
        %v1644 = vld [vmem:[%s394 + $0x60] sm:$0xff]
        %v1645 = vld [vmem:[%s394 + $0x68] sm:$0xff]
        %v1646 = vld [vmem:[%s394 + $0x70] sm:$0xff]
        %v1647 = vld [vmem:[%s394 + $0x78] sm:$0xff]
        %v1648 = vadd.f32 %v1616, %v1632
        %v1649 = vadd.f32 %v1617, %v1633
        %v1650 = vadd.f32 %v1618, %v1634
        %v1651 = vadd.f32 %v1619, %v1635
        %v1652 = vadd.f32 %v1620, %v1636
        %v1653 = vadd.f32 %v1621, %v1637
        %v1654 = vadd.f32 %v1622, %v1638
        %v1655 = vadd.f32 %v1623, %v1639
        %v1656 = vadd.f32 %v1624, %v1640
        %v1657 = vadd.f32 %v1625, %v1641
        %v1658 = vadd.f32 %v1626, %v1642
        %v1659 = vadd.f32 %v1627, %v1643
        %v1660 = vadd.f32 %v1628, %v1644
        %v1661 = vadd.f32 %v1629, %v1645
        %v1662 = vadd.f32 %v1630, %v1646
        %v1663 = vadd.f32 %v1631, %v1647
        %1664 = vst.msk [vmem:[%s414] sm:$0xff] %vm648, %v1648
        %1665 = vst.msk [vmem:[%s414 + $0x8] sm:$0xff] %vm648, %v1649
        %1666 = vst.msk [vmem:[%s414 + $0x10] sm:$0xff] %vm648, %v1650
        %1667 = vst.msk [vmem:[%s414 + $0x18] sm:$0xff] %vm648, %v1651
        %1668 = vst.msk [vmem:[%s414 + $0x20] sm:$0xff] %vm648, %v1652
        %1669 = vst.msk [vmem:[%s414 + $0x28] sm:$0xff] %vm648, %v1653
        %1670 = vst.msk [vmem:[%s414 + $0x30] sm:$0xff] %vm648, %v1654
        %1671 = vst.msk [vmem:[%s414 + $0x38] sm:$0xff] %vm648, %v1655
        %1672 = vst.msk [vmem:[%s414 + $0x40] sm:$0xff] %vm648, %v1656
        %1673 = vst.msk [vmem:[%s414 + $0x48] sm:$0xff] %vm648, %v1657
        %1674 = vst.msk [vmem:[%s414 + $0x50] sm:$0xff] %vm648, %v1658
        %1675 = vst.msk [vmem:[%s414 + $0x58] sm:$0xff] %vm648, %v1659
        %1676 = vst.msk [vmem:[%s414 + $0x60] sm:$0xff] %vm648, %v1660
        %1677 = vst.msk [vmem:[%s414 + $0x68] sm:$0xff] %vm648, %v1661
        %1678 = vst.msk [vmem:[%s414 + $0x70] sm:$0xff] %vm648, %v1662
        %1679 = vst.msk [vmem:[%s414 + $0x78] sm:$0xff] %vm648, %v1663
      $region64: #{tpu_custom_call.1} parent=55 // pred_fallthru
        _
      %s1680 = smul.u32 16, %s27
      %p1681 = scmp.lt.s32.totalorder %s26, 1
      %s1682 = scalar_select %p1681, %s26, 1
      %p1683 = scmp.lt.s32.totalorder %s1680, 31
      %s1684 = scalar_select %p1683, %s1680, 31
      %s1685 = smul.addr %s1682, 32
      %s1686 = sadd.s32 %s1684, %s1685
      %s1687 = smul.addr %s1686, 8
      %s1688 = scalar_lea.vmem %s9, %s1687
      // Predicated region
      $region65: #{tpu_custom_call.1} parent=55 // pred_check
        %p1689 = pneg %p263
      $region66: #{tpu_custom_call.1} parent=55 // pred_check_branch
        %1691 = sbr.rel (%p1689) target = $region68
      $region67: #{tpu_custom_call.1} parent=55 // pred_region
        %s1692 = smul.u32 16, %s27
      $region68: #{tpu_custom_call.1} parent=55 // pred_fallthru
        _
    $region56: #{tpu_custom_call.1} parent=5 // pred_fallthru
      _
    %p1693 = scmp.le.s32.totalorder 2, %s16
    // Predicated region
    $region69: #{tpu_custom_call.1} parent=5 // pred_check
      %p1694 = pneg %p1693
    $region70: #{tpu_custom_call.1} parent=5 // pred_check_branch
      %1696 = sbr.rel (%p1694) target = $region72
    $region71: #{tpu_custom_call.1} parent=5 // pred_region
      %s1697 = ssub.s32 %s16, 2
      // Predicated region
      $region73: #{tpu_custom_call.1} parent=71 // pred_check
        %p1698 = pneg %p269
      $region74: #{tpu_custom_call.1} parent=71 // pred_check_branch
        %1700 = sbr.rel (%p1698) target = $region76
      $region75: #{tpu_custom_call.1} parent=71 // pred_region
        %s1701 = smul.u32 16, %s30
        %p1702 = scmp.lt.s32.totalorder %s29, 1
        %s1703 = scalar_select %p1702, %s29, 1
        %p1704 = scmp.lt.s32.totalorder %s1701, 31
        %s1705 = scalar_select %p1704, %s1701, 31
        %s1706 = smul.addr %s1703, 32
        %s1707 = sadd.s32 %s1705, %s1706
        %s1708 = smul.addr %s1707, 8
        %s1709 = scalar_lea.vmem %s9, %s1708
      $region76: #{tpu_custom_call.1} parent=71 // pred_fallthru
        _
    $region72: #{tpu_custom_call.1} parent=5 // pred_fallthru
      _
  $region6: #{tpu_custom_call.1} parent=0 // loop_footer
    %s20 = sadd.s32 1, %s16
  $region7: #{tpu_custom_call.1} parent=0 // loop_footer_branch
    %15 = sbr.rel target = $region3
  $region8: #{tpu_custom_call.1} parent=0 // loop_exit
    _

</llo_original>
